<compile_context>
chip_gen: v5e
topology: v5e:2x2
jax: 0.10.0
libtpu: 0.0.40
codegen_flags: <defaults>
</compile_context>

<pallas_src>
import functools

import jax
import jax.numpy as jnp
from jax.experimental import pallas as pl
from jax.experimental.pallas import tpu as pltpu

_LANE = 128


def _round_up(x, m):
    return ((x + m - 1) // m) * m


def _vae_kernel(xin_ref,
                ew1_ref, ew2_ref, ew3_ref, whead_ref,
                dw1_ref, dw2_ref, dw3_ref, dw4_ref,
                bias_ref,
                out_ref, *, n_features, latent):
    f32 = jnp.float32
    # All biases packed into one [8, W] array; load once per tile.
    bpack = bias_ref[...]

    def linear(h, w_ref, row):
        w = w_ref[...]
        b = bpack[row:row + 1, :w.shape[1]]           # static prefix slice
        return jnp.dot(h, w, preferred_element_type=f32) + b

    relu = lambda v: jnp.maximum(v, 0.0)

    xin = xin_ref[...]                                # x in [0,F), eps in sigma lanes

    # ---- Encoder (ew1 has zero rows outside [0,F), so no slicing of xin) ----
    h = relu(linear(xin, ew1_ref, 0))
    h = relu(linear(h, ew2_ref, 1))
    h = relu(linear(h, ew3_ref, 2))

    # ---- Fused mu|sigma head, already aligned to output lanes ----
    head = linear(h, whead_ref, 3)                    # [tb, W]
    lane = jax.lax.broadcasted_iota(jnp.int32, head.shape, 1)
    mu_lane = (lane >= n_features) & (lane < n_features + latent)
    sg_lane = (lane >= n_features + latent) & (lane < n_features + 2 * latent)
    # exp only meaningful on sigma lanes; mask first so junk lanes can't overflow.
    sigma_full = jnp.where(sg_lane, jnp.exp(jnp.where(sg_lane, head, 0.0)), 0.0)

    # ---- Reparameterized sample z ~ Normal(mu, sigma), kept as a full-lane slab:
    # mu in mu-lanes, sigma*eps in sigma-lanes, 0 elsewhere.  dw1 rows are
    # duplicated over both lane groups, so dot(z_slab, dw1_dup) == z @ dw1.
    z_slab = jnp.where(mu_lane, head, sigma_full * xin)

    # ---- Decoder ----
    d = relu(linear(z_slab, dw1_ref, 4))
    d = relu(linear(d, dw2_ref, 5))
    d = relu(linear(d, dw3_ref, 6))
    recon = linear(d, dw4_ref, 7)                     # recon in lanes [0,F), 0 elsewhere

    # ---- Single fused, unmasked full-lane output store ----
    out_ref[...] = recon + jnp.where(mu_lane, head, sigma_full)


def _linear_params(key, fan_in, fan_out):
    """PyTorch-style nn.Linear init: U(-1/sqrt(fan_in), 1/sqrt(fan_in)).

    Weight returned already transposed to [in, out]; bias as [1, out].
    """
    kw, kb = jax.random.split(key)
    bound = 1.0 / float(fan_in) ** 0.5
    w = jax.random.uniform(kw, (fan_in, fan_out), jnp.float32, -bound, bound)
    b = jax.random.uniform(kb, (1, fan_out), jnp.float32, -bound, bound)
    return w, b


def make_vae_params(size_input_layer, size_layer_one, size_layer_two,
                    size_layer_three, size_latent_space, seed=0):
    keys = jax.random.split(jax.random.PRNGKey(seed), 9)
    p = []
    # Encoder
    p += _linear_params(keys[0], size_input_layer, size_layer_one)
    p += _linear_params(keys[1], size_layer_one, size_layer_two)
    p += _linear_params(keys[2], size_layer_two, size_layer_three)
    p += _linear_params(keys[3], size_layer_three, size_latent_space)   # mu head
    p += _linear_params(keys[4], size_layer_three, size_latent_space)   # sigma head
    # Decoder
    p += _linear_params(keys[5], size_latent_space, size_layer_three)
    p += _linear_params(keys[6], size_layer_three, size_layer_two)
    p += _linear_params(keys[7], size_layer_two, size_layer_one)
    p += _linear_params(keys[8], size_layer_one, size_input_layer)
    return tuple(p)


def pack_vae_params(params, size_input_layer, size_latent_space):
    """Pad/pack weights into the single-slab lane layout used by the kernel."""
    (ew1, eb1, ew2, eb2, ew3, eb3, ewmu, ebmu, ewsg, ebsg,
     dw1, db1, dw2, db2, dw3, db3, dw4, db4) = params
    f32 = jnp.float32
    F = size_input_layer
    L = size_latent_space
    W = _round_up(F + 2 * L, _LANE)       # slab width shared by input / head / output

    # Encoder layer 1: contraction rows padded to W (x sits in lanes [0, F)).
    ew1p = jnp.zeros((W, ew1.shape[1]), f32).at[:F, :].set(ew1)

    # Fused mu|sigma head aligned to output lanes [F, F+L) / [F+L, F+2L).
    wheadp = jnp.zeros((ewmu.shape[0], W), f32)
    wheadp = wheadp.at[:, F:F + L].set(ewmu).at[:, F + L:F + 2 * L].set(ewsg)
    bheadp = jnp.zeros((1, W), f32)
    bheadp = bheadp.at[:, F:F + L].set(ebmu).at[:, F + L:F + 2 * L].set(ebsg)

    # Decoder layer 1 with duplicated contraction rows:
    # rows [F, F+L) = dw1 (hits mu lanes), rows [F+L, F+2L) = dw1 (hits sigma*eps lanes).
    dw1d = jnp.zeros((W, dw1.shape[1]), f32)
    dw1d = dw1d.at[F:F + L, :].set(dw1).at[F + L:F + 2 * L, :].set(dw1)

    # Decoder output layer padded to W lanes (recon in lanes [0, F)).
    dw4p = jnp.zeros((dw4.shape[0], W), f32).at[:, :F].set(dw4)
    db4p = jnp.zeros((1, W), f32).at[:, :F].set(db4)

    # Pack every bias into one [8, W] array (row i = layer i).
    biases = (eb1, eb2, eb3, bheadp, db1, db2, db3, db4p)
    bias_pack = jnp.zeros((len(biases), W), f32)
    for i, b in enumerate(biases):
        bias_pack = bias_pack.at[i, :b.shape[1]].set(b[0])

    return (ew1p, ew2, ew3, wheadp, dw1d, dw2, dw3, dw4p, bias_pack)


@functools.partial(jax.jit, static_argnames=("tile_b",))
def vae_forward(x, eps, packed, *, tile_b=512):
    """Full VAE forward in one gridded Pallas kernel.

    x:      [B, size_input_layer] float32
    eps:    [B, size_latent_space] float32 (reparameterization noise)
    packed: output of pack_vae_params
    Returns (reconstruction, mu, sigma).
    """
    B, F = x.shape
    latent = eps.shape[1]
    (ew1, ew2, ew3, whead, dw1, dw2, dw3, dw4, bias_pack) = packed
    W = whead.shape[1]

    # Batch tile: multiple of 8 sublanes, <= tile_b, and clamped so the parallel
    # grid keeps >= 2 steps whenever possible (both TensorCores on v7x).
    half = (B + 1) // 2
    tb = max(8, min(tile_b, _round_up(half, 8)))
    bp = _round_up(B, tb)
    grid = (bp // tb,)

    # Single lane-dense input slab: x in lanes [0,F), eps in [F+latent, F+2*latent).
    xin = jnp.zeros((bp, W), jnp.float32)
    xin = xin.at[:B, :F].set(x)
    xin = xin.at[:B, F + latent:F + 2 * latent].set(eps)

    def resident(a):
        # Full-extent block with constant index_map -> stays VMEM-resident.
        # (Weights total <100 KiB; default double-buffering cost is negligible,
        #  so pl.Buffered(1) is intentionally skipped for compile portability.)
        return pl.BlockSpec(a.shape, lambda i: (0,) * a.ndim)

    in_specs = [
        pl.BlockSpec((tb, W), lambda i: (i, 0)),
        resident(ew1), resident(ew2), resident(ew3), resident(whead),
        resident(dw1), resident(dw2), resident(dw3), resident(dw4),
        resident(bias_pack),
    ]
    out_specs = pl.BlockSpec((tb, W), lambda i: (i, 0))
    out_shape = jax.ShapeDtypeStruct((bp, W), jnp.float32)

    weights = (ew1, ew2, ew3, whead, dw1, dw2, dw3, dw4)
    flops = 2 * bp * sum(int(w.shape[0]) * int(w.shape[1]) for w in weights)
    param_bytes = 4 * (sum(int(w.size) for w in weights) + int(bias_pack.size))
    io_bytes = 4 * bp * (W + W)
    cost = pl.CostEstimate(flops=flops,
                           transcendentals=bp * W,
                           bytes_accessed=param_bytes + io_bytes)

    out = pl.pallas_call(
        functools.partial(_vae_kernel, n_features=F, latent=latent),
        out_shape=out_shape,
        grid=grid,
        in_specs=in_specs,
        out_specs=out_specs,
        compiler_params=pltpu.CompilerParams(
            dimension_semantics=("parallel",),
            vmem_limit_bytes=32 * 1024 * 1024),
        cost_estimate=cost,
    )(xin, ew1, ew2, ew3, whead, dw1, dw2, dw3, dw4, bias_pack)

    recon = out[:B, :F]
    mu = out[:B, F:F + latent]
    sigma = out[:B, F + latent:F + 2 * latent]
    return recon, mu, sigma


def _reference_forward(x, eps, params):
    """Plain-JAX reference (mirrors the PyTorch forward), highest precision."""
    (ew1, eb1, ew2, eb2, ew3, eb3, ewmu, ebmu, ewsg, ebsg,
     dw1, db1, dw2, db2, dw3, db3, dw4, db4) = params
    hi = jax.lax.Precision.HIGHEST
    mm = lambda a, b: jnp.dot(a, b, precision=hi)
    relu = lambda v: jnp.maximum(v, 0.0)
    h = relu(mm(x, ew1) + eb1)
    h = relu(mm(h, ew2) + eb2)
    h = relu(mm(h, ew3) + eb3)
    mu = mm(h, ewmu) + ebmu
    sigma = jnp.exp(mm(h, ewsg) + ebsg)
    z = mu + sigma * eps
    d = relu(mm(z, dw1) + db1)
    d = relu(mm(d, dw2) + db2)
    d = relu(mm(d, dw3) + db3)
    recon = mm(d, dw4) + db4
    return recon, mu, sigma


def _check(batch, sizes, params, packed, key):
    size_input_layer, _, _, _, size_latent_space = sizes
    kx, keps = jax.random.split(key)
    x = jax.random.normal(kx, (batch, size_input_layer), jnp.float32)
    eps = jax.random.normal(keps, (batch, size_latent_space), jnp.float32)

    recon, mu, sigma = vae_forward(x, eps, packed)
    jax.block_until_ready((recon, mu, sigma))

    r_ref, mu_ref, sg_ref = _reference_forward(x, eps, params)
    assert recon.shape == (batch, size_input_layer)
    assert mu.shape == (batch, size_latent_space)
    assert sigma.shape == (batch, size_latent_space)
    # Small tolerance slack for MXU f32 pass / accumulation-order differences.
    assert jnp.allclose(recon, r_ref, atol=2e-4, rtol=2e-4)
    assert jnp.allclose(mu, mu_ref, atol=2e-4, rtol=2e-4)
    assert jnp.allclose(sigma, sg_ref, atol=2e-4, rtol=2e-4)


if __name__ == "__main__":
    # Small, forward-consistent sizes (latent < layer3 < layer2 < layer1 < input).
    size_input_layer = 64
    size_layer_one = 48
    size_layer_two = 32
    size_layer_three = 24
    size_latent_space = 16
    sizes = (size_input_layer, size_layer_one, size_layer_two,
             size_layer_three, size_latent_space)

    params = make_vae_params(*sizes, seed=0)
    packed = pack_vae_params(params, size_input_layer, size_latent_space)

    key = jax.random.PRNGKey(0)
    k1, k2 = jax.random.split(key)
    # Multi-tile batch (exercises the 2-step parallel batch grid).
    _check(256, sizes, params, packed, k1)
    # Non-multiple batch (exercises the pad-and-slice tail path).
    _check(20, sizes, params, packed, k2)

    print("KERNEL_OK")
</pallas_src>

<mosaic_0001>
module attributes {stable_mosaic.version = 11 : i64} {
  func.func @_vae_kernel(%arg0: i32, %arg1: memref<128x128xf32, #tpu.memory_space<vmem>>, %arg2: memref<128x48xf32, #tpu.memory_space<vmem>>, %arg3: memref<48x32xf32, #tpu.memory_space<vmem>>, %arg4: memref<32x24xf32, #tpu.memory_space<vmem>>, %arg5: memref<24x128xf32, #tpu.memory_space<vmem>>, %arg6: memref<128x24xf32, #tpu.memory_space<vmem>>, %arg7: memref<24x32xf32, #tpu.memory_space<vmem>>, %arg8: memref<32x48xf32, #tpu.memory_space<vmem>>, %arg9: memref<48x128xf32, #tpu.memory_space<vmem>>, %arg10: memref<8x128xf32, #tpu.memory_space<vmem>>, %arg11: memref<128x128xf32, #tpu.memory_space<vmem>>) attributes {dimension_semantics = [#tpu.dimension_semantics<parallel>], iteration_bounds = array<i64: 2>, scalar_prefetch = 0 : i64, scratch_operands = 0 : i64, tpu.core_type = #tpu.core_type<tc>, window_params = [{transform_indices = @transform_0, window_bounds = array<i64: 128, 128>}, {pipeline_mode = #tpu.pipeline_mode<synchronous>, transform_indices = @transform_1, window_bounds = array<i64: 128, 48>}, {pipeline_mode = #tpu.pipeline_mode<synchronous>, transform_indices = @transform_2, window_bounds = array<i64: 48, 32>}, {pipeline_mode = #tpu.pipeline_mode<synchronous>, transform_indices = @transform_3, window_bounds = array<i64: 32, 24>}, {pipeline_mode = #tpu.pipeline_mode<synchronous>, transform_indices = @transform_4, window_bounds = array<i64: 24, 128>}, {pipeline_mode = #tpu.pipeline_mode<synchronous>, transform_indices = @transform_5, window_bounds = array<i64: 128, 24>}, {pipeline_mode = #tpu.pipeline_mode<synchronous>, transform_indices = @transform_6, window_bounds = array<i64: 24, 32>}, {pipeline_mode = #tpu.pipeline_mode<synchronous>, transform_indices = @transform_7, window_bounds = array<i64: 32, 48>}, {pipeline_mode = #tpu.pipeline_mode<synchronous>, transform_indices = @transform_8, window_bounds = array<i64: 48, 128>}, {pipeline_mode = #tpu.pipeline_mode<synchronous>, transform_indices = @transform_9, window_bounds = array<i64: 8, 128>}, {transform_indices = @transform_10, window_bounds = array<i64: 128, 128>}]} {
    %c0 = arith.constant 0 : index
    %c0_0 = arith.constant 0 : index
    %0 = vector.load %arg10[%c0, %c0_0] : memref<8x128xf32, #tpu.memory_space<vmem>>, vector<8x128xf32>
    %c0_1 = arith.constant 0 : index
    %c0_2 = arith.constant 0 : index
    %1 = vector.load %arg1[%c0_1, %c0_2] : memref<128x128xf32, #tpu.memory_space<vmem>>, vector<128x128xf32>
    %c0_3 = arith.constant 0 : index
    %c0_4 = arith.constant 0 : index
    %2 = vector.load %arg2[%c0_3, %c0_4] : memref<128x48xf32, #tpu.memory_space<vmem>>, vector<128x48xf32>
    %3 = vector.extract_strided_slice %0 {offsets = [0, 0], sizes = [1, 48], strides = [1, 1]} : vector<8x128xf32> to vector<1x48xf32>
    %cst = arith.constant dense<0.000000e+00> : vector<128x48xf32>
    %4 = tpu.matmul %1, %2, %cst {dimension_numbers = #tpu.dot_dimension_numbers<[1], [0], [0], [1], [0, 0, 1, 1], [], []>} : vector<128x128xf32>, vector<128x48xf32>, vector<128x48xf32> -> vector<128x48xf32>
    %5 = vector.broadcast %3 : vector<1x48xf32> to vector<128x48xf32>
    %6 = arith.addf %4, %5 : vector<128x48xf32>
    %cst_5 = arith.constant 0.000000e+00 : f32
    %7 = vector.broadcast %cst_5 : f32 to vector<128x48xf32>
    %8 = arith.maximumf %6, %7 : vector<128x48xf32>
    %c0_6 = arith.constant 0 : index
    %c0_7 = arith.constant 0 : index
    %9 = vector.load %arg3[%c0_6, %c0_7] : memref<48x32xf32, #tpu.memory_space<vmem>>, vector<48x32xf32>
    %10 = vector.extract_strided_slice %0 {offsets = [1, 0], sizes = [1, 32], strides = [1, 1]} : vector<8x128xf32> to vector<1x32xf32>
    %cst_8 = arith.constant dense<0.000000e+00> : vector<128x32xf32>
    %11 = tpu.matmul %8, %9, %cst_8 {dimension_numbers = #tpu.dot_dimension_numbers<[1], [0], [0], [1], [0, 0, 1, 1], [], []>} : vector<128x48xf32>, vector<48x32xf32>, vector<128x32xf32> -> vector<128x32xf32>
    %12 = vector.broadcast %10 : vector<1x32xf32> to vector<128x32xf32>
    %13 = arith.addf %11, %12 : vector<128x32xf32>
    %cst_9 = arith.constant 0.000000e+00 : f32
    %14 = vector.broadcast %cst_9 : f32 to vector<128x32xf32>
    %15 = arith.maximumf %13, %14 : vector<128x32xf32>
    %c0_10 = arith.constant 0 : index
    %c0_11 = arith.constant 0 : index
    %16 = vector.load %arg4[%c0_10, %c0_11] : memref<32x24xf32, #tpu.memory_space<vmem>>, vector<32x24xf32>
    %17 = vector.extract_strided_slice %0 {offsets = [2, 0], sizes = [1, 24], strides = [1, 1]} : vector<8x128xf32> to vector<1x24xf32>
    %cst_12 = arith.constant dense<0.000000e+00> : vector<128x24xf32>
    %18 = tpu.matmul %15, %16, %cst_12 {dimension_numbers = #tpu.dot_dimension_numbers<[1], [0], [0], [1], [0, 0, 1, 1], [], []>} : vector<128x32xf32>, vector<32x24xf32>, vector<128x24xf32> -> vector<128x24xf32>
    %19 = vector.broadcast %17 : vector<1x24xf32> to vector<128x24xf32>
    %20 = arith.addf %18, %19 : vector<128x24xf32>
    %cst_13 = arith.constant 0.000000e+00 : f32
    %21 = vector.broadcast %cst_13 : f32 to vector<128x24xf32>
    %22 = arith.maximumf %20, %21 : vector<128x24xf32>
    %c0_14 = arith.constant 0 : index
    %c0_15 = arith.constant 0 : index
    %23 = vector.load %arg5[%c0_14, %c0_15] : memref<24x128xf32, #tpu.memory_space<vmem>>, vector<24x128xf32>
    %24 = vector.extract_strided_slice %0 {offsets = [3, 0], sizes = [1, 128], strides = [1, 1]} : vector<8x128xf32> to vector<1x128xf32>
    %cst_16 = arith.constant dense<0.000000e+00> : vector<128x128xf32>
    %25 = tpu.matmul %22, %23, %cst_16 {dimension_numbers = #tpu.dot_dimension_numbers<[1], [0], [0], [1], [0, 0, 1, 1], [], []>} : vector<128x24xf32>, vector<24x128xf32>, vector<128x128xf32> -> vector<128x128xf32>
    %26 = vector.broadcast %24 : vector<1x128xf32> to vector<128x128xf32>
    %27 = arith.addf %25, %26 : vector<128x128xf32>
    %28 = tpu.iota {dimensions = array<i32: 1>} : vector<128x128xi32>
    %c64_i32 = arith.constant 64 : i32
    %29 = vector.broadcast %c64_i32 : i32 to vector<128x128xi32>
    %30 = arith.cmpi sge, %28, %29 : vector<128x128xi32>
    %c80_i32 = arith.constant 80 : i32
    %31 = vector.broadcast %c80_i32 : i32 to vector<128x128xi32>
    %32 = arith.cmpi slt, %28, %31 : vector<128x128xi32>
    %33 = arith.andi %30, %32 : vector<128x128xi1>
    %c80_i32_17 = arith.constant 80 : i32
    %34 = vector.broadcast %c80_i32_17 : i32 to vector<128x128xi32>
    %35 = arith.cmpi sge, %28, %34 : vector<128x128xi32>
    %c96_i32 = arith.constant 96 : i32
    %36 = vector.broadcast %c96_i32 : i32 to vector<128x128xi32>
    %37 = arith.cmpi slt, %28, %36 : vector<128x128xi32>
    %38 = arith.andi %35, %37 : vector<128x128xi1>
    %cst_18 = arith.constant 0.000000e+00 : f32
    %39 = vector.broadcast %cst_18 : f32 to vector<128x128xf32>
    %40 = arith.select %38, %27, %39 : vector<128x128xi1>, vector<128x128xf32>
    %41 = math.exp %40 : vector<128x128xf32>
    %cst_19 = arith.constant 0.000000e+00 : f32
    %42 = vector.broadcast %cst_19 : f32 to vector<128x128xf32>
    %43 = arith.select %38, %41, %42 : vector<128x128xi1>, vector<128x128xf32>
    %44 = arith.mulf %43, %1 : vector<128x128xf32>
    %45 = arith.select %33, %27, %44 : vector<128x128xi1>, vector<128x128xf32>
    %c0_20 = arith.constant 0 : index
    %c0_21 = arith.constant 0 : index
    %46 = vector.load %arg6[%c0_20, %c0_21] : memref<128x24xf32, #tpu.memory_space<vmem>>, vector<128x24xf32>
    %47 = vector.extract_strided_slice %0 {offsets = [4, 0], sizes = [1, 24], strides = [1, 1]} : vector<8x128xf32> to vector<1x24xf32>
    %cst_22 = arith.constant dense<0.000000e+00> : vector<128x24xf32>
    %48 = tpu.matmul %45, %46, %cst_22 {dimension_numbers = #tpu.dot_dimension_numbers<[1], [0], [0], [1], [0, 0, 1, 1], [], []>} : vector<128x128xf32>, vector<128x24xf32>, vector<128x24xf32> -> vector<128x24xf32>
    %49 = vector.broadcast %47 : vector<1x24xf32> to vector<128x24xf32>
    %50 = arith.addf %48, %49 : vector<128x24xf32>
    %cst_23 = arith.constant 0.000000e+00 : f32
    %51 = vector.broadcast %cst_23 : f32 to vector<128x24xf32>
    %52 = arith.maximumf %50, %51 : vector<128x24xf32>
    %c0_24 = arith.constant 0 : index
    %c0_25 = arith.constant 0 : index
    %53 = vector.load %arg7[%c0_24, %c0_25] : memref<24x32xf32, #tpu.memory_space<vmem>>, vector<24x32xf32>
    %54 = vector.extract_strided_slice %0 {offsets = [5, 0], sizes = [1, 32], strides = [1, 1]} : vector<8x128xf32> to vector<1x32xf32>
    %cst_26 = arith.constant dense<0.000000e+00> : vector<128x32xf32>
    %55 = tpu.matmul %52, %53, %cst_26 {dimension_numbers = #tpu.dot_dimension_numbers<[1], [0], [0], [1], [0, 0, 1, 1], [], []>} : vector<128x24xf32>, vector<24x32xf32>, vector<128x32xf32> -> vector<128x32xf32>
    %56 = vector.broadcast %54 : vector<1x32xf32> to vector<128x32xf32>
    %57 = arith.addf %55, %56 : vector<128x32xf32>
    %cst_27 = arith.constant 0.000000e+00 : f32
    %58 = vector.broadcast %cst_27 : f32 to vector<128x32xf32>
    %59 = arith.maximumf %57, %58 : vector<128x32xf32>
    %c0_28 = arith.constant 0 : index
    %c0_29 = arith.constant 0 : index
    %60 = vector.load %arg8[%c0_28, %c0_29] : memref<32x48xf32, #tpu.memory_space<vmem>>, vector<32x48xf32>
    %61 = vector.extract_strided_slice %0 {offsets = [6, 0], sizes = [1, 48], strides = [1, 1]} : vector<8x128xf32> to vector<1x48xf32>
    %cst_30 = arith.constant dense<0.000000e+00> : vector<128x48xf32>
    %62 = tpu.matmul %59, %60, %cst_30 {dimension_numbers = #tpu.dot_dimension_numbers<[1], [0], [0], [1], [0, 0, 1, 1], [], []>} : vector<128x32xf32>, vector<32x48xf32>, vector<128x48xf32> -> vector<128x48xf32>
    %63 = vector.broadcast %61 : vector<1x48xf32> to vector<128x48xf32>
    %64 = arith.addf %62, %63 : vector<128x48xf32>
    %cst_31 = arith.constant 0.000000e+00 : f32
    %65 = vector.broadcast %cst_31 : f32 to vector<128x48xf32>
    %66 = arith.maximumf %64, %65 : vector<128x48xf32>
    %c0_32 = arith.constant 0 : index
    %c0_33 = arith.constant 0 : index
    %67 = vector.load %arg9[%c0_32, %c0_33] : memref<48x128xf32, #tpu.memory_space<vmem>>, vector<48x128xf32>
    %68 = vector.extract_strided_slice %0 {offsets = [7, 0], sizes = [1, 128], strides = [1, 1]} : vector<8x128xf32> to vector<1x128xf32>
    %cst_34 = arith.constant dense<0.000000e+00> : vector<128x128xf32>
    %69 = tpu.matmul %66, %67, %cst_34 {dimension_numbers = #tpu.dot_dimension_numbers<[1], [0], [0], [1], [0, 0, 1, 1], [], []>} : vector<128x48xf32>, vector<48x128xf32>, vector<128x128xf32> -> vector<128x128xf32>
    %70 = vector.broadcast %68 : vector<1x128xf32> to vector<128x128xf32>
    %71 = arith.addf %69, %70 : vector<128x128xf32>
    %72 = arith.select %33, %27, %43 : vector<128x128xi1>, vector<128x128xf32>
    %73 = arith.addf %71, %72 : vector<128x128xf32>
    %c0_35 = arith.constant 0 : index
    %c0_36 = arith.constant 0 : index
    %74 = vector.load %arg11[%c0_35, %c0_36] : memref<128x128xf32, #tpu.memory_space<vmem>>, vector<128x128xf32>
    tpu.vector_store %arg11[%c0_35, %c0_36], %73 {strides = array<i32>} : memref<128x128xf32, #tpu.memory_space<vmem>>, vector<128x128xf32>,
    return
  }
  func.func @transform_0(%arg0: i32) -> (i32, i32) {
    %c0_i32 = arith.constant 0 : i32
    %c0_i32_0 = arith.constant 0 : i32
    return %arg0, %c0_i32 : i32, i32
  }
  func.func @transform_1(%arg0: i32) -> (i32, i32) {
    %c0_i32 = arith.constant 0 : i32
    %c0_i32_0 = arith.constant 0 : i32
    %c0_i32_1 = arith.constant 0 : i32
    return %c0_i32, %c0_i32_0 : i32, i32
  }
  func.func @transform_2(%arg0: i32) -> (i32, i32) {
    %c0_i32 = arith.constant 0 : i32
    %c0_i32_0 = arith.constant 0 : i32
    %c0_i32_1 = arith.constant 0 : i32
    return %c0_i32, %c0_i32_0 : i32, i32
  }
  func.func @transform_3(%arg0: i32) -> (i32, i32) {
    %c0_i32 = arith.constant 0 : i32
    %c0_i32_0 = arith.constant 0 : i32
    %c0_i32_1 = arith.constant 0 : i32
    return %c0_i32, %c0_i32_0 : i32, i32
  }
  func.func @transform_4(%arg0: i32) -> (i32, i32) {
    %c0_i32 = arith.constant 0 : i32
    %c0_i32_0 = arith.constant 0 : i32
    %c0_i32_1 = arith.constant 0 : i32
    return %c0_i32, %c0_i32_0 : i32, i32
  }
  func.func @transform_5(%arg0: i32) -> (i32, i32) {
    %c0_i32 = arith.constant 0 : i32
    %c0_i32_0 = arith.constant 0 : i32
    %c0_i32_1 = arith.constant 0 : i32
    return %c0_i32, %c0_i32_0 : i32, i32
  }
  func.func @transform_6(%arg0: i32) -> (i32, i32) {
    %c0_i32 = arith.constant 0 : i32
    %c0_i32_0 = arith.constant 0 : i32
    %c0_i32_1 = arith.constant 0 : i32
    return %c0_i32, %c0_i32_0 : i32, i32
  }
  func.func @transform_7(%arg0: i32) -> (i32, i32) {
    %c0_i32 = arith.constant 0 : i32
    %c0_i32_0 = arith.constant 0 : i32
    %c0_i32_1 = arith.constant 0 : i32
    return %c0_i32, %c0_i32_0 : i32, i32
  }
  func.func @transform_8(%arg0: i32) -> (i32, i32) {
    %c0_i32 = arith.constant 0 : i32
    %c0_i32_0 = arith.constant 0 : i32
    %c0_i32_1 = arith.constant 0 : i32
    return %c0_i32, %c0_i32_0 : i32, i32
  }
  func.func @transform_9(%arg0: i32) -> (i32, i32) {
    %c0_i32 = arith.constant 0 : i32
    %c0_i32_0 = arith.constant 0 : i32
    %c0_i32_1 = arith.constant 0 : i32
    return %c0_i32, %c0_i32_0 : i32, i32
  }
  func.func @transform_10(%arg0: i32) -> (i32, i32) {
    %c0_i32 = arith.constant 0 : i32
    %c0_i32_0 = arith.constant 0 : i32
    return %arg0, %c0_i32 : i32, i32
  }
}

</mosaic_0001>

<llo_original>
// kernel: vae_forward.1
$region0: #{vae_forward.1}
  #allocation0 [shape = 'u32[]', space=smem, size = 0x4, offset = 0x4, fixed_abs, tag = 'smem constant byte address 0x4 - core index']
  #allocation1 [shape = 'u32[72,128]{1,0:T(1,128)}', space=vmem, size = 0x9000, scoped, tag = 'internal scratch']
  %s0 = inlined_call_operand.vmem [shape: f32[256,128], index: 0, kind: input, shape index: {}]
  %s1 = inlined_call_operand.vmem [shape: f32[128,48], index: 1, kind: input, shape index: {}]
  %s2 = inlined_call_operand.vmem [shape: f32[48,32], index: 2, kind: input, shape index: {}]
  %s3 = inlined_call_operand.vmem [shape: f32[32,24], index: 3, kind: input, shape index: {}]
  %s4 = inlined_call_operand.vmem [shape: f32[24,128], index: 4, kind: input, shape index: {}]
  %s5 = inlined_call_operand.vmem [shape: f32[128,24], index: 5, kind: input, shape index: {}]
  %s6 = inlined_call_operand.vmem [shape: f32[24,32], index: 6, kind: input, shape index: {}]
  %s7 = inlined_call_operand.vmem [shape: f32[32,48], index: 7, kind: input, shape index: {}]
  %s8 = inlined_call_operand.vmem [shape: f32[48,128], index: 8, kind: input, shape index: {}]
  %s9 = inlined_call_operand.vmem [shape: f32[8,128], index: 9, kind: input, shape index: {}]
  %s10 = inlined_call_operand.vmem [shape: f32[256,128], index: 10, kind: output, shape index: {}]
  %s11 = sld [smem:[#allocation0]]
  $region73: #{vae_forward.1} parent=0
    _
  %s13 = ssub.s32 1, %s11
  %s14 = scalar_select 0, %s13, %s11
  loop: start=0, step=1, limit=4
  $region2: #{vae_forward.1} parent=0 // loop_pre_header
    _
  $region3: #{vae_forward.1} parent=0 // loop_header
    %s16 = sphi 0, %s20
    %p17 = scmp.ge.s32.totalorder %s16, 4
    %s26 = sphi 0, %s28
    %s29 = sphi 0, %s26
    %s30 = sphi 0, %s29
    %s46 = sphi 0, %s30
    %s50 = sphi 0, %s50
    %s52 = sphi 0, %s50
    %s53 = sphi 0, %s52
    %s67 = sphi 0, %s53
    %s71 = sphi 0, %s71
    %s73 = sphi 0, %s71
    %s74 = sphi 0, %s73
    %s88 = sphi 0, %s74
    %s92 = sphi 0, %s92
    %s94 = sphi 0, %s92
    %s95 = sphi 0, %s94
    %s109 = sphi 0, %s95
    %s113 = sphi 0, %s113
    %s115 = sphi 0, %s113
    %s116 = sphi 0, %s115
    %s130 = sphi 0, %s116
    %s134 = sphi 0, %s134
    %s136 = sphi 0, %s134
    %s137 = sphi 0, %s136
    %s151 = sphi 0, %s137
    %s155 = sphi 0, %s155
    %s157 = sphi 0, %s155
    %s158 = sphi 0, %s157
    %s172 = sphi 0, %s158
    %s176 = sphi 0, %s176
    %s178 = sphi 0, %s176
    %s179 = sphi 0, %s178
    %s193 = sphi 0, %s179
    %s197 = sphi 0, %s197
    %s199 = sphi 0, %s197
    %s200 = sphi 0, %s199
    %s214 = sphi 0, %s200
    %s218 = sphi 0, %s218
    %s220 = sphi 0, %s218
    %s221 = sphi 0, %s220
    %s235 = sphi 0, %s221
    %s241 = sphi 0, %s243
    %s244 = sphi 0, %s241
    %s245 = sphi 0, %s244
    %s261 = sphi 0, %s245
  $region4: #{vae_forward.1} parent=0 // loop_header_branch
    %19 = sbr.rel (%p17) target = $region8
  $region5: #{vae_forward.1} parent=0 // loop_body
    %s21 = ssub.s32 %s16, 1
    %s22 = ssub.s32 %s16, 2
    %s23 = sadd.s32 %s16, 1
    %s24 = ssub.s32 %s16, %s23
    %p25 = scmp.eq.s32.totalorder %s24, 0
    %s27 = sadd.s32 %s26, 1
    %s28 = scalar_select %p25, %s26, %s27
    %p31 = pneg %p25
    %p32 = scmp.eq.s32.totalorder %s16, 1
    %p33 = por %p31, %p32
    %p34 = scmp.ne.s32.totalorder %s26, %s29
    %p35 = scmp.eq.s32.totalorder %s16, 0
    %p36 = por %p34, %p35
    %p37 = scmp.ne.s32.totalorder %s26, %s29
    %p38 = scmp.eq.s32.totalorder %s21, 1
    %p39 = por %p37, %p38
    %p40 = scmp.ne.s32.totalorder %s29, %s30
    %p41 = scmp.eq.s32.totalorder %s21, 0
    %p42 = por %p40, %p41
    %p43 = scmp.ne.s32.totalorder %s29, %s30
    %p44 = scmp.eq.s32.totalorder %s22, 1
    %p45 = por %p43, %p44
    %p47 = scmp.ne.s32.totalorder %s30, %s46
    %p48 = scmp.eq.s32.totalorder %s22, 0
    %p49 = por %p47, %p48
    %s51 = sadd.s32 %s50, 1
    %p54 = scmp.eq.s32.totalorder %s16, 1
    %p55 = scmp.ne.s32.totalorder %s50, %s52
    %p56 = scmp.eq.s32.totalorder %s16, 0
    %p57 = por %p55, %p56
    %p58 = scmp.ne.s32.totalorder %s50, %s52
    %p59 = scmp.eq.s32.totalorder %s21, 1
    %p60 = por %p58, %p59
    %p61 = scmp.ne.s32.totalorder %s52, %s53
    %p62 = scmp.eq.s32.totalorder %s21, 0
    %p63 = por %p61, %p62
    %p64 = scmp.ne.s32.totalorder %s52, %s53
    %p65 = scmp.eq.s32.totalorder %s22, 1
    %p66 = por %p64, %p65
    %p68 = scmp.ne.s32.totalorder %s53, %s67
    %p69 = scmp.eq.s32.totalorder %s22, 0
    %p70 = por %p68, %p69
    %s72 = sadd.s32 %s71, 1
    %p75 = scmp.eq.s32.totalorder %s16, 1
    %p76 = scmp.ne.s32.totalorder %s71, %s73
    %p77 = scmp.eq.s32.totalorder %s16, 0
    %p78 = por %p76, %p77
    %p79 = scmp.ne.s32.totalorder %s71, %s73
    %p80 = scmp.eq.s32.totalorder %s21, 1
    %p81 = por %p79, %p80
    %p82 = scmp.ne.s32.totalorder %s73, %s74
    %p83 = scmp.eq.s32.totalorder %s21, 0
    %p84 = por %p82, %p83
    %p85 = scmp.ne.s32.totalorder %s73, %s74
    %p86 = scmp.eq.s32.totalorder %s22, 1
    %p87 = por %p85, %p86
    %p89 = scmp.ne.s32.totalorder %s74, %s88
    %p90 = scmp.eq.s32.totalorder %s22, 0
    %p91 = por %p89, %p90
    %s93 = sadd.s32 %s92, 1
    %p96 = scmp.eq.s32.totalorder %s16, 1
    %p97 = scmp.ne.s32.totalorder %s92, %s94
    %p98 = scmp.eq.s32.totalorder %s16, 0
    %p99 = por %p97, %p98
    %p100 = scmp.ne.s32.totalorder %s92, %s94
    %p101 = scmp.eq.s32.totalorder %s21, 1
    %p102 = por %p100, %p101
    %p103 = scmp.ne.s32.totalorder %s94, %s95
    %p104 = scmp.eq.s32.totalorder %s21, 0
    %p105 = por %p103, %p104
    %p106 = scmp.ne.s32.totalorder %s94, %s95
    %p107 = scmp.eq.s32.totalorder %s22, 1
    %p108 = por %p106, %p107
    %p110 = scmp.ne.s32.totalorder %s95, %s109
    %p111 = scmp.eq.s32.totalorder %s22, 0
    %p112 = por %p110, %p111
    %s114 = sadd.s32 %s113, 1
    %p117 = scmp.eq.s32.totalorder %s16, 1
    %p118 = scmp.ne.s32.totalorder %s113, %s115
    %p119 = scmp.eq.s32.totalorder %s16, 0
    %p120 = por %p118, %p119
    %p121 = scmp.ne.s32.totalorder %s113, %s115
    %p122 = scmp.eq.s32.totalorder %s21, 1
    %p123 = por %p121, %p122
    %p124 = scmp.ne.s32.totalorder %s115, %s116
    %p125 = scmp.eq.s32.totalorder %s21, 0
    %p126 = por %p124, %p125
    %p127 = scmp.ne.s32.totalorder %s115, %s116
    %p128 = scmp.eq.s32.totalorder %s22, 1
    %p129 = por %p127, %p128
    %p131 = scmp.ne.s32.totalorder %s116, %s130
    %p132 = scmp.eq.s32.totalorder %s22, 0
    %p133 = por %p131, %p132
    %s135 = sadd.s32 %s134, 1
    %p138 = scmp.eq.s32.totalorder %s16, 1
    %p139 = scmp.ne.s32.totalorder %s134, %s136
    %p140 = scmp.eq.s32.totalorder %s16, 0
    %p141 = por %p139, %p140
    %p142 = scmp.ne.s32.totalorder %s134, %s136
    %p143 = scmp.eq.s32.totalorder %s21, 1
    %p144 = por %p142, %p143
    %p145 = scmp.ne.s32.totalorder %s136, %s137
    %p146 = scmp.eq.s32.totalorder %s21, 0
    %p147 = por %p145, %p146
    %p148 = scmp.ne.s32.totalorder %s136, %s137
    %p149 = scmp.eq.s32.totalorder %s22, 1
    %p150 = por %p148, %p149
    %p152 = scmp.ne.s32.totalorder %s137, %s151
    %p153 = scmp.eq.s32.totalorder %s22, 0
    %p154 = por %p152, %p153
    %s156 = sadd.s32 %s155, 1
    %p159 = scmp.eq.s32.totalorder %s16, 1
    %p160 = scmp.ne.s32.totalorder %s155, %s157
    %p161 = scmp.eq.s32.totalorder %s16, 0
    %p162 = por %p160, %p161
    %p163 = scmp.ne.s32.totalorder %s155, %s157
    %p164 = scmp.eq.s32.totalorder %s21, 1
    %p165 = por %p163, %p164
    %p166 = scmp.ne.s32.totalorder %s157, %s158
    %p167 = scmp.eq.s32.totalorder %s21, 0
    %p168 = por %p166, %p167
    %p169 = scmp.ne.s32.totalorder %s157, %s158
    %p170 = scmp.eq.s32.totalorder %s22, 1
    %p171 = por %p169, %p170
    %p173 = scmp.ne.s32.totalorder %s158, %s172
    %p174 = scmp.eq.s32.totalorder %s22, 0
    %p175 = por %p173, %p174
    %s177 = sadd.s32 %s176, 1
    %p180 = scmp.eq.s32.totalorder %s16, 1
    %p181 = scmp.ne.s32.totalorder %s176, %s178
    %p182 = scmp.eq.s32.totalorder %s16, 0
    %p183 = por %p181, %p182
    %p184 = scmp.ne.s32.totalorder %s176, %s178
    %p185 = scmp.eq.s32.totalorder %s21, 1
    %p186 = por %p184, %p185
    %p187 = scmp.ne.s32.totalorder %s178, %s179
    %p188 = scmp.eq.s32.totalorder %s21, 0
    %p189 = por %p187, %p188
    %p190 = scmp.ne.s32.totalorder %s178, %s179
    %p191 = scmp.eq.s32.totalorder %s22, 1
    %p192 = por %p190, %p191
    %p194 = scmp.ne.s32.totalorder %s179, %s193
    %p195 = scmp.eq.s32.totalorder %s22, 0
    %p196 = por %p194, %p195
    %s198 = sadd.s32 %s197, 1
    %p201 = scmp.eq.s32.totalorder %s16, 1
    %p202 = scmp.ne.s32.totalorder %s197, %s199
    %p203 = scmp.eq.s32.totalorder %s16, 0
    %p204 = por %p202, %p203
    %p205 = scmp.ne.s32.totalorder %s197, %s199
    %p206 = scmp.eq.s32.totalorder %s21, 1
    %p207 = por %p205, %p206
    %p208 = scmp.ne.s32.totalorder %s199, %s200
    %p209 = scmp.eq.s32.totalorder %s21, 0
    %p210 = por %p208, %p209
    %p211 = scmp.ne.s32.totalorder %s199, %s200
    %p212 = scmp.eq.s32.totalorder %s22, 1
    %p213 = por %p211, %p212
    %p215 = scmp.ne.s32.totalorder %s200, %s214
    %p216 = scmp.eq.s32.totalorder %s22, 0
    %p217 = por %p215, %p216
    %s219 = sadd.s32 %s218, 1
    %p222 = scmp.eq.s32.totalorder %s16, 1
    %p223 = scmp.ne.s32.totalorder %s218, %s220
    %p224 = scmp.eq.s32.totalorder %s16, 0
    %p225 = por %p223, %p224
    %p226 = scmp.ne.s32.totalorder %s218, %s220
    %p227 = scmp.eq.s32.totalorder %s21, 1
    %p228 = por %p226, %p227
    %p229 = scmp.ne.s32.totalorder %s220, %s221
    %p230 = scmp.eq.s32.totalorder %s21, 0
    %p231 = por %p229, %p230
    %p232 = scmp.ne.s32.totalorder %s220, %s221
    %p233 = scmp.eq.s32.totalorder %s22, 1
    %p234 = por %p232, %p233
    %p236 = scmp.ne.s32.totalorder %s221, %s235
    %p237 = scmp.eq.s32.totalorder %s22, 0
    %p238 = por %p236, %p237
    %s239 = ssub.s32 %s16, %s23
    %p240 = scmp.eq.s32.totalorder %s239, 0
    %s242 = sadd.s32 %s241, 1
    %s243 = scalar_select %p240, %s241, %s242
    %p246 = pneg %p240
    %p247 = scmp.eq.s32.totalorder %s16, 1
    %p248 = por %p246, %p247
    %p249 = scmp.ne.s32.totalorder %s241, %s244
    %p250 = scmp.eq.s32.totalorder %s16, 0
    %p251 = por %p249, %p250
    %p252 = scmp.ne.s32.totalorder %s241, %s244
    %p253 = scmp.eq.s32.totalorder %s21, 1
    %p254 = por %p252, %p253
    %p255 = scmp.ne.s32.totalorder %s244, %s245
    %p256 = scmp.eq.s32.totalorder %s21, 0
    %p257 = por %p255, %p256
    %p258 = scmp.ne.s32.totalorder %s244, %s245
    %p259 = scmp.eq.s32.totalorder %s22, 1
    %p260 = por %p258, %p259
    %p262 = scmp.ne.s32.totalorder %s245, %s261
    %p263 = scmp.eq.s32.totalorder %s22, 0
    %p264 = por %p262, %p263
    %p265 = scmp.le.s32.totalorder 1, %s16
    %p266 = scmp.lt.s32.totalorder %s16, 3
    %p267 = pnand %p265, %p266
    %p268 = pneg %p267
    // Predicated region
    $region9: #{vae_forward.1} parent=5 // pred_check
      _
    $region10: #{vae_forward.1} parent=5 // pred_check_branch
      %270 = sbr.rel (%p267) target = $region12
    $region11: #{vae_forward.1} parent=5 // pred_region
      %s271 = ssub.s32 %s16, 1
      // Predicated region
      $region13: #{vae_forward.1} parent=11 // pred_check
        %p272 = pneg %p63
      $region14: #{vae_forward.1} parent=11 // pred_check_branch
        %274 = sbr.rel (%p272) target = $region16
      $region15: #{vae_forward.1} parent=11 // pred_region
        _
      $region16: #{vae_forward.1} parent=11 // pred_fallthru
        _
      // Predicated region
      $region17: #{vae_forward.1} parent=11 // pred_check
        %p275 = pneg %p84
      $region18: #{vae_forward.1} parent=11 // pred_check_branch
        %277 = sbr.rel (%p275) target = $region20
      $region19: #{vae_forward.1} parent=11 // pred_region
        _
      $region20: #{vae_forward.1} parent=11 // pred_fallthru
        _
      // Predicated region
      $region21: #{vae_forward.1} parent=11 // pred_check
        %p278 = pneg %p105
      $region22: #{vae_forward.1} parent=11 // pred_check_branch
        %280 = sbr.rel (%p278) target = $region24
      $region23: #{vae_forward.1} parent=11 // pred_region
        _
      $region24: #{vae_forward.1} parent=11 // pred_fallthru
        _
      // Predicated region
      $region25: #{vae_forward.1} parent=11 // pred_check
        %p281 = pneg %p126
      $region26: #{vae_forward.1} parent=11 // pred_check_branch
        %283 = sbr.rel (%p281) target = $region28
      $region27: #{vae_forward.1} parent=11 // pred_region
        _
      $region28: #{vae_forward.1} parent=11 // pred_fallthru
        _
      // Predicated region
      $region29: #{vae_forward.1} parent=11 // pred_check
        %p284 = pneg %p147
      $region30: #{vae_forward.1} parent=11 // pred_check_branch
        %286 = sbr.rel (%p284) target = $region32
      $region31: #{vae_forward.1} parent=11 // pred_region
        _
      $region32: #{vae_forward.1} parent=11 // pred_fallthru
        _
      // Predicated region
      $region33: #{vae_forward.1} parent=11 // pred_check
        %p287 = pneg %p168
      $region34: #{vae_forward.1} parent=11 // pred_check_branch
        %289 = sbr.rel (%p287) target = $region36
      $region35: #{vae_forward.1} parent=11 // pred_region
        _
      $region36: #{vae_forward.1} parent=11 // pred_fallthru
        _
      // Predicated region
      $region37: #{vae_forward.1} parent=11 // pred_check
        %p290 = pneg %p189
      $region38: #{vae_forward.1} parent=11 // pred_check_branch
        %292 = sbr.rel (%p290) target = $region40
      $region39: #{vae_forward.1} parent=11 // pred_region
        _
      $region40: #{vae_forward.1} parent=11 // pred_fallthru
        _
      // Predicated region
      $region41: #{vae_forward.1} parent=11 // pred_check
        %p293 = pneg %p210
      $region42: #{vae_forward.1} parent=11 // pred_check_branch
        %295 = sbr.rel (%p293) target = $region44
      $region43: #{vae_forward.1} parent=11 // pred_region
        _
      $region44: #{vae_forward.1} parent=11 // pred_fallthru
        _
      // Predicated region
      $region45: #{vae_forward.1} parent=11 // pred_check
        %p296 = pneg %p231
      $region46: #{vae_forward.1} parent=11 // pred_check_branch
        %298 = sbr.rel (%p296) target = $region48
      $region47: #{vae_forward.1} parent=11 // pred_region
        _
      $region48: #{vae_forward.1} parent=11 // pred_fallthru
        _
    $region12: #{vae_forward.1} parent=5 // pred_fallthru
      _
    %p299 = scmp.lt.s32.totalorder %s16, 2
    // Predicated region
    $region49: #{vae_forward.1} parent=5 // pred_check
      %p300 = pneg %p299
    $region50: #{vae_forward.1} parent=5 // pred_check_branch
      %302 = sbr.rel (%p300) target = $region52
    $region51: #{vae_forward.1} parent=5 // pred_region
      // Predicated region
      $region53: #{vae_forward.1} parent=51 // pred_check
        %p303 = pneg %p36
      $region54: #{vae_forward.1} parent=51 // pred_check_branch
        %305 = sbr.rel (%p303) target = $region56
      $region55: #{vae_forward.1} parent=51 // pred_region
        %s306 = smul.u32 16, %s16
        %p307 = scmp.lt.s32.totalorder %s306, 31
        %s308 = scalar_select %p307, %s306, 31
        %s309 = smul.addr %s308, 8
        %s310 = scalar_lea.vmem %s0, %s309
        %s311 = smul.u32 16, %s16
      $region56: #{vae_forward.1} parent=51 // pred_fallthru
        _
    $region52: #{vae_forward.1} parent=5 // pred_fallthru
      _
    %p312 = scmp.le.s32.totalorder 1, %s16
    %p313 = scmp.lt.s32.totalorder %s16, 3
    %p314 = pnand %p312, %p313
    %p315 = pneg %p314
    // Predicated region
    $region57: #{vae_forward.1} parent=5 // pred_check
      _
    $region58: #{vae_forward.1} parent=5 // pred_check_branch
      %317 = sbr.rel (%p314) target = $region60
    $region59: #{vae_forward.1} parent=5 // pred_region
      %s318 = ssub.s32 %s16, 1
      %s319 = smul.u32 16, %s21
      %p320 = scmp.lt.s32.totalorder %s319, 31
      %s321 = scalar_select %p320, %s319, 31
      %s322 = smul.addr %s321, 8
      %s323 = scalar_lea.vmem %s0, %s322
      %p324 = pneg %p42
      %p325 = pneg %p39
      %p326 = pneg %p63
      %p327 = pneg %p60
      %p328 = pneg %p84
      %p329 = pneg %p81
      %p330 = pneg %p105
      %p331 = pneg %p102
      %p332 = pneg %p126
      %p333 = pneg %p123
      %p334 = pneg %p147
      %p335 = pneg %p144
      %p336 = pneg %p168
      %p337 = pneg %p165
      %p338 = pneg %p189
      %p339 = pneg %p186
      %p340 = pneg %p210
      %p341 = pneg %p207
      %p342 = pneg %p231
      %p343 = pneg %p228
      %p344 = pneg %p257
      %p345 = pneg %p254
      %s346 = smul.u32 16, %s21
      %p347 = scmp.lt.s32.totalorder %s346, 31
      %s348 = scalar_select %p347, %s346, 31
      %s349 = smul.addr %s348, 8
      %s350 = scalar_lea.vmem %s10, %s349
      %s351 = smul.u32 16, %s21
      %p352 = scmp.lt.s32.totalorder %s351, 31
      %s353 = scalar_select %p352, %s351, 31
      %s354 = smul.addr %s353, 8
      %s355 = scalar_lea.vmem %s0, %s354
      %s356 = smul.u32 16, %s21
      %s357 = smul.u32 16, %s21
      %p358 = scmp.lt.s32.totalorder %s357, 31
      %s359 = scalar_select %p358, %s357, 31
      %s360 = smul.addr %s359, 8
      %s361 = scalar_lea.vmem %s10, %s360
      %s362 = smul.u32 16, %s21
      %v363 = vld [vmem:[%s9] sm:$0xff]
      %v364 = vld [vmem:[%s355] sm:$0xff]
      %v365 = vld [vmem:[%s355 + $0x8] sm:$0xff]
      %v366 = vld [vmem:[%s355 + $0x10] sm:$0xff]
      %v367 = vld [vmem:[%s355 + $0x18] sm:$0xff]
      %v368 = vld [vmem:[%s355 + $0x20] sm:$0xff]
      %v369 = vld [vmem:[%s355 + $0x28] sm:$0xff]
      %v370 = vld [vmem:[%s355 + $0x30] sm:$0xff]
      %v371 = vld [vmem:[%s355 + $0x38] sm:$0xff]
      %v372 = vld [vmem:[%s355 + $0x40] sm:$0xff]
      %v373 = vld [vmem:[%s355 + $0x48] sm:$0xff]
      %v374 = vld [vmem:[%s355 + $0x50] sm:$0xff]
      %v375 = vld [vmem:[%s355 + $0x58] sm:$0xff]
      %v376 = vld [vmem:[%s355 + $0x60] sm:$0xff]
      %v377 = vld [vmem:[%s355 + $0x68] sm:$0xff]
      %v378 = vld [vmem:[%s355 + $0x70] sm:$0xff]
      %v379 = vld [vmem:[%s355 + $0x78] sm:$0xff]
      %v380 = vld [vmem:[%s1] sm:$0xff]
      %v381 = vld [vmem:[%s1 + $0x8] sm:$0xff]
      %v382 = vld [vmem:[%s1 + $0x10] sm:$0xff]
      %v383 = vld [vmem:[%s1 + $0x18] sm:$0xff]
      %v384 = vld [vmem:[%s1 + $0x20] sm:$0xff]
      %v385 = vld [vmem:[%s1 + $0x28] sm:$0xff]
      %v386 = vld [vmem:[%s1 + $0x30] sm:$0xff]
      %v387 = vld [vmem:[%s1 + $0x38] sm:$0xff]
      %v388 = vld [vmem:[%s1 + $0x40] sm:$0xff]
      %v389 = vld [vmem:[%s1 + $0x48] sm:$0xff]
      %v390 = vld [vmem:[%s1 + $0x50] sm:$0xff]
      %v391 = vld [vmem:[%s1 + $0x58] sm:$0xff]
      %v392 = vld [vmem:[%s1 + $0x60] sm:$0xff]
      %v393 = vld [vmem:[%s1 + $0x68] sm:$0xff]
      %v394 = vld [vmem:[%s1 + $0x70] sm:$0xff]
      %v395 = vld [vmem:[%s1 + $0x78] sm:$0xff]
      %v396 = vperm.slane %v363, 0
      %397 = vmatpush.msra.mxu0 %v395
      %398 = vmatpush.msra.mxu0 %v394
      %399 = vmatpush.msra.mxu0 %v393
      %400 = vmatpush.msra.mxu0 %v392
      %401 = vmatpush.msra.mxu0 %v391
      %402 = vmatpush.msra.mxu0 %v390
      %403 = vmatpush.msra.mxu0 %v389
      %404 = vmatpush.msra.mxu0 %v388
      %405 = vmatpush.msra.mxu0 %v387
      %406 = vmatpush.msra.mxu0 %v386
      %407 = vmatpush.msra.mxu0 %v385
      %408 = vmatpush.msra.mxu0 %v384
      %409 = vmatpush.msra.mxu0 %v383
      %410 = vmatpush.msra.mxu0 %v382
      %411 = vmatpush.msra.mxu0 %v381
      %412 = vmatpush.msra.mxu0 %v380
      %413 = vmatmul.f32.gmra.mxu0 %v364
      %v414 = vpop.f32.mrf.mxu0
      %v415 = vadd.f32 %v396, %v414
      %416 = vmatmul.f32.gmra.mxu0 %v365
      %v417 = vpop.f32.mrf.mxu0
      %v418 = vadd.f32 %v396, %v417
      %419 = vmatmul.f32.gmra.mxu0 %v366
      %v420 = vpop.f32.mrf.mxu0
      %v421 = vadd.f32 %v396, %v420
      %422 = vmatmul.f32.gmra.mxu0 %v367
      %v423 = vpop.f32.mrf.mxu0
      %v424 = vadd.f32 %v396, %v423
      %425 = vmatmul.f32.gmra.mxu0 %v368
      %v426 = vpop.f32.mrf.mxu0
      %v427 = vadd.f32 %v396, %v426
      %428 = vmatmul.f32.gmra.mxu0 %v369
      %v429 = vpop.f32.mrf.mxu0
      %v430 = vadd.f32 %v396, %v429
      %431 = vmatmul.f32.gmra.mxu0 %v370
      %v432 = vpop.f32.mrf.mxu0
      %v433 = vadd.f32 %v396, %v432
      %434 = vmatmul.f32.gmra.mxu0 %v371
      %v435 = vpop.f32.mrf.mxu0
      %v436 = vadd.f32 %v396, %v435
      %437 = vmatmul.f32.gmra.mxu0 %v372
      %v438 = vpop.f32.mrf.mxu0
      %v439 = vadd.f32 %v396, %v438
      %440 = vmatmul.f32.gmra.mxu0 %v373
      %v441 = vpop.f32.mrf.mxu0
      %v442 = vadd.f32 %v396, %v441
      %443 = vmatmul.f32.gmra.mxu0 %v374
      %v444 = vpop.f32.mrf.mxu0
      %v445 = vadd.f32 %v396, %v444
      %446 = vmatmul.f32.gmra.mxu0 %v375
      %v447 = vpop.f32.mrf.mxu0
      %v448 = vadd.f32 %v396, %v447
      %449 = vmatmul.f32.gmra.mxu0 %v376
      %v450 = vpop.f32.mrf.mxu0
      %v451 = vadd.f32 %v396, %v450
      %452 = vmatmul.f32.gmra.mxu0 %v377
      %v453 = vpop.f32.mrf.mxu0
      %v454 = vadd.f32 %v396, %v453
      %455 = vmatmul.f32.gmra.mxu0 %v378
      %v456 = vpop.f32.mrf.mxu0
      %v457 = vadd.f32 %v396, %v456
      %458 = vmatmul.f32.gmra.mxu0 %v379
      %v459 = vpop.f32.mrf.mxu0
      %v460 = vadd.f32 %v396, %v459
      %461 = vdwg.mxu0
      %v462 = vmax.f32 %v415, 0.0
      %v463 = vmax.f32 %v418, 0.0
      %v464 = vmax.f32 %v421, 0.0
      %v465 = vmax.f32 %v424, 0.0
      %v466 = vmax.f32 %v427, 0.0
      %v467 = vmax.f32 %v430, 0.0
      %v468 = vmax.f32 %v433, 0.0
      %v469 = vmax.f32 %v436, 0.0
      %v470 = vmax.f32 %v439, 0.0
      %v471 = vmax.f32 %v442, 0.0
      %v472 = vmax.f32 %v445, 0.0
      %v473 = vmax.f32 %v448, 0.0
      %v474 = vmax.f32 %v451, 0.0
      %v475 = vmax.f32 %v454, 0.0
      %v476 = vmax.f32 %v457, 0.0
      %v477 = vmax.f32 %v460, 0.0
      %v478 = vld [vmem:[%s2] sm:$0xff]
      %v479 = vld [vmem:[%s2 + $0x8] sm:$0xff]
      %v480 = vld [vmem:[%s2 + $0x10] sm:$0xff]
      %v481 = vld [vmem:[%s2 + $0x18] sm:$0xff]
      %v482 = vld [vmem:[%s2 + $0x20] sm:$0xff]
      %v483 = vld [vmem:[%s2 + $0x28] sm:$0xff]
      %v484 = vperm.slane %v363, 1
      %vm485 = vcmask 392192
      %v487 = vsel %vm485, %v462, 0
      %v490 = vsel %vm485, %v463, 0
      %v493 = vsel %vm485, %v464, 0
      %v496 = vsel %vm485, %v465, 0
      %v499 = vsel %vm485, %v466, 0
      %v502 = vsel %vm485, %v467, 0
      %v505 = vsel %vm485, %v468, 0
      %v508 = vsel %vm485, %v469, 0
      %v511 = vsel %vm485, %v470, 0
      %v514 = vsel %vm485, %v471, 0
      %v517 = vsel %vm485, %v472, 0
      %v520 = vsel %vm485, %v473, 0
      %v523 = vsel %vm485, %v474, 0
      %v526 = vsel %vm485, %v475, 0
      %v529 = vsel %vm485, %v476, 0
      %v532 = vsel %vm485, %v477, 0
      %534 = vmatpush.msra.mxu0 0.0
      %535 = vmatpush.msra.mxu0 0.0
      %536 = vmatpush.msra.mxu0 0.0
      %537 = vmatpush.msra.mxu0 0.0
      %538 = vmatpush.msra.mxu0 0.0
      %539 = vmatpush.msra.mxu0 0.0
      %540 = vmatpush.msra.mxu0 0.0
      %541 = vmatpush.msra.mxu0 0.0
      %542 = vmatpush.msra.mxu0 0.0
      %543 = vmatpush.msra.mxu0 0.0
      %544 = vmatpush.msra.mxu0 %v483
      %545 = vmatpush.msra.mxu0 %v482
      %546 = vmatpush.msra.mxu0 %v481
      %547 = vmatpush.msra.mxu0 %v480
      %548 = vmatpush.msra.mxu0 %v479
      %549 = vmatpush.msra.mxu0 %v478
      %550 = vmatmul.f32.gmra.mxu0 %v487
      %v551 = vpop.f32.mrf.mxu0
      %v552 = vadd.f32 %v484, %v551
      %553 = vmatmul.f32.gmra.mxu0 %v490
      %v554 = vpop.f32.mrf.mxu0
      %v555 = vadd.f32 %v484, %v554
      %556 = vmatmul.f32.gmra.mxu0 %v493
      %v557 = vpop.f32.mrf.mxu0
      %v558 = vadd.f32 %v484, %v557
      %559 = vmatmul.f32.gmra.mxu0 %v496
      %v560 = vpop.f32.mrf.mxu0
      %v561 = vadd.f32 %v484, %v560
      %562 = vmatmul.f32.gmra.mxu0 %v499
      %v563 = vpop.f32.mrf.mxu0
      %v564 = vadd.f32 %v484, %v563
      %565 = vmatmul.f32.gmra.mxu0 %v502
      %v566 = vpop.f32.mrf.mxu0
      %v567 = vadd.f32 %v484, %v566
      %568 = vmatmul.f32.gmra.mxu0 %v505
      %v569 = vpop.f32.mrf.mxu0
      %v570 = vadd.f32 %v484, %v569
      %571 = vmatmul.f32.gmra.mxu0 %v508
      %v572 = vpop.f32.mrf.mxu0
      %v573 = vadd.f32 %v484, %v572
      %574 = vmatmul.f32.gmra.mxu0 %v511
      %v575 = vpop.f32.mrf.mxu0
      %v576 = vadd.f32 %v484, %v575
      %577 = vmatmul.f32.gmra.mxu0 %v514
      %v578 = vpop.f32.mrf.mxu0
      %v579 = vadd.f32 %v484, %v578
      %580 = vmatmul.f32.gmra.mxu0 %v517
      %v581 = vpop.f32.mrf.mxu0
      %v582 = vadd.f32 %v484, %v581
      %583 = vmatmul.f32.gmra.mxu0 %v520
      %v584 = vpop.f32.mrf.mxu0
      %v585 = vadd.f32 %v484, %v584
      %586 = vmatmul.f32.gmra.mxu0 %v523
      %v587 = vpop.f32.mrf.mxu0
      %v588 = vadd.f32 %v484, %v587
      %589 = vmatmul.f32.gmra.mxu0 %v526
      %v590 = vpop.f32.mrf.mxu0
      %v591 = vadd.f32 %v484, %v590
      %592 = vmatmul.f32.gmra.mxu0 %v529
      %v593 = vpop.f32.mrf.mxu0
      %v594 = vadd.f32 %v484, %v593
      %595 = vmatmul.f32.gmra.mxu0 %v532
      %v596 = vpop.f32.mrf.mxu0
      %v597 = vadd.f32 %v484, %v596
      %598 = vdwg.mxu0
      %v599 = vmax.f32 %v552, 0.0
      %v600 = vmax.f32 %v555, 0.0
      %v601 = vmax.f32 %v558, 0.0
      %v602 = vmax.f32 %v561, 0.0
      %v603 = vmax.f32 %v564, 0.0
      %v604 = vmax.f32 %v567, 0.0
      %v605 = vmax.f32 %v570, 0.0
      %v606 = vmax.f32 %v573, 0.0
      %v607 = vmax.f32 %v576, 0.0
      %v608 = vmax.f32 %v579, 0.0
      %v609 = vmax.f32 %v582, 0.0
      %v610 = vmax.f32 %v585, 0.0
      %v611 = vmax.f32 %v588, 0.0
      %v612 = vmax.f32 %v591, 0.0
      %v613 = vmax.f32 %v594, 0.0
      %v614 = vmax.f32 %v597, 0.0
      %v615 = vld [vmem:[%s3] sm:$0xff]
      %v616 = vld [vmem:[%s3 + $0x8] sm:$0xff]
      %v617 = vld [vmem:[%s3 + $0x10] sm:$0xff]
      %v618 = vld [vmem:[%s3 + $0x18] sm:$0xff]
      %v619 = vperm.slane %v363, 2
      %vm620 = vcmask 261120
      %v622 = vsel %vm620, %v599, 0
      %v625 = vsel %vm620, %v600, 0
      %v628 = vsel %vm620, %v601, 0
      %v631 = vsel %vm620, %v602, 0
      %v634 = vsel %vm620, %v603, 0
      %v637 = vsel %vm620, %v604, 0
      %v640 = vsel %vm620, %v605, 0
      %v643 = vsel %vm620, %v606, 0
      %v646 = vsel %vm620, %v607, 0
      %v649 = vsel %vm620, %v608, 0
      %v652 = vsel %vm620, %v609, 0
      %v655 = vsel %vm620, %v610, 0
      %v658 = vsel %vm620, %v611, 0
      %v661 = vsel %vm620, %v612, 0
      %v664 = vsel %vm620, %v613, 0
      %v667 = vsel %vm620, %v614, 0
      %669 = vmatpush.msra.mxu0 0.0
      %670 = vmatpush.msra.mxu0 0.0
      %671 = vmatpush.msra.mxu0 0.0
      %672 = vmatpush.msra.mxu0 0.0
      %673 = vmatpush.msra.mxu0 0.0
      %674 = vmatpush.msra.mxu0 0.0
      %675 = vmatpush.msra.mxu0 0.0
      %676 = vmatpush.msra.mxu0 0.0
      %677 = vmatpush.msra.mxu0 0.0
      %678 = vmatpush.msra.mxu0 0.0
      %679 = vmatpush.msra.mxu0 0.0
      %680 = vmatpush.msra.mxu0 0.0
      %681 = vmatpush.msra.mxu0 %v618
      %682 = vmatpush.msra.mxu0 %v617
      %683 = vmatpush.msra.mxu0 %v616
      %684 = vmatpush.msra.mxu0 %v615
      %685 = vmatmul.f32.gmra.mxu0 %v622
      %v686 = vpop.f32.mrf.mxu0
      %v687 = vadd.f32 %v619, %v686
      %688 = vmatmul.f32.gmra.mxu0 %v625
      %v689 = vpop.f32.mrf.mxu0
      %v690 = vadd.f32 %v619, %v689
      %691 = vmatmul.f32.gmra.mxu0 %v628
      %v692 = vpop.f32.mrf.mxu0
      %v693 = vadd.f32 %v619, %v692
      %694 = vmatmul.f32.gmra.mxu0 %v631
      %v695 = vpop.f32.mrf.mxu0
      %v696 = vadd.f32 %v619, %v695
      %697 = vmatmul.f32.gmra.mxu0 %v634
      %v698 = vpop.f32.mrf.mxu0
      %v699 = vadd.f32 %v619, %v698
      %700 = vmatmul.f32.gmra.mxu0 %v637
      %v701 = vpop.f32.mrf.mxu0
      %v702 = vadd.f32 %v619, %v701
      %703 = vmatmul.f32.gmra.mxu0 %v640
      %v704 = vpop.f32.mrf.mxu0
      %v705 = vadd.f32 %v619, %v704
      %706 = vmatmul.f32.gmra.mxu0 %v643
      %v707 = vpop.f32.mrf.mxu0
      %v708 = vadd.f32 %v619, %v707
      %709 = vmatmul.f32.gmra.mxu0 %v646
      %v710 = vpop.f32.mrf.mxu0
      %v711 = vadd.f32 %v619, %v710
      %712 = vmatmul.f32.gmra.mxu0 %v649
      %v713 = vpop.f32.mrf.mxu0
      %v714 = vadd.f32 %v619, %v713
      %715 = vmatmul.f32.gmra.mxu0 %v652
      %v716 = vpop.f32.mrf.mxu0
      %v717 = vadd.f32 %v619, %v716
      %718 = vmatmul.f32.gmra.mxu0 %v655
      %v719 = vpop.f32.mrf.mxu0
      %v720 = vadd.f32 %v619, %v719
      %721 = vmatmul.f32.gmra.mxu0 %v658
      %v722 = vpop.f32.mrf.mxu0
      %v723 = vadd.f32 %v619, %v722
      %724 = vmatmul.f32.gmra.mxu0 %v661
      %v725 = vpop.f32.mrf.mxu0
      %v726 = vadd.f32 %v619, %v725
      %727 = vmatmul.f32.gmra.mxu0 %v664
      %v728 = vpop.f32.mrf.mxu0
      %v729 = vadd.f32 %v619, %v728
      %730 = vmatmul.f32.gmra.mxu0 %v667
      %v731 = vpop.f32.mrf.mxu0
      %v732 = vadd.f32 %v619, %v731
      %733 = vdwg.mxu0
      %v734 = vmax.f32 %v687, 0.0
      %v735 = vmax.f32 %v690, 0.0
      %v736 = vmax.f32 %v693, 0.0
      %v737 = vmax.f32 %v696, 0.0
      %v738 = vmax.f32 %v699, 0.0
      %v739 = vmax.f32 %v702, 0.0
      %v740 = vmax.f32 %v705, 0.0
      %v741 = vmax.f32 %v708, 0.0
      %v742 = vmax.f32 %v711, 0.0
      %v743 = vmax.f32 %v714, 0.0
      %v744 = vmax.f32 %v717, 0.0
      %v745 = vmax.f32 %v720, 0.0
      %v746 = vmax.f32 %v723, 0.0
      %v747 = vmax.f32 %v726, 0.0
      %v748 = vmax.f32 %v729, 0.0
      %v749 = vmax.f32 %v732, 0.0
      %v750 = vld [vmem:[%s4] sm:$0xff]
      %v751 = vld [vmem:[%s4 + $0x8] sm:$0xff]
      %v752 = vld [vmem:[%s4 + $0x10] sm:$0xff]
      %v753 = vperm.slane %v363, 3
      %vm754 = vcmask 195584
      %v756 = vsel %vm754, %v734, 0
      %v759 = vsel %vm754, %v735, 0
      %v762 = vsel %vm754, %v736, 0
      %v765 = vsel %vm754, %v737, 0
      %v768 = vsel %vm754, %v738, 0
      %v771 = vsel %vm754, %v739, 0
      %v774 = vsel %vm754, %v740, 0
      %v777 = vsel %vm754, %v741, 0
      %v780 = vsel %vm754, %v742, 0
      %v783 = vsel %vm754, %v743, 0
      %v786 = vsel %vm754, %v744, 0
      %v789 = vsel %vm754, %v745, 0
      %v792 = vsel %vm754, %v746, 0
      %v795 = vsel %vm754, %v747, 0
      %v798 = vsel %vm754, %v748, 0
      %v801 = vsel %vm754, %v749, 0
      %803 = vmatpush.msra.mxu0 0.0
      %804 = vmatpush.msra.mxu0 0.0
      %805 = vmatpush.msra.mxu0 0.0
      %806 = vmatpush.msra.mxu0 0.0
      %807 = vmatpush.msra.mxu0 0.0
      %808 = vmatpush.msra.mxu0 0.0
      %809 = vmatpush.msra.mxu0 0.0
      %810 = vmatpush.msra.mxu0 0.0
      %811 = vmatpush.msra.mxu0 0.0
      %812 = vmatpush.msra.mxu0 0.0
      %813 = vmatpush.msra.mxu0 0.0
      %814 = vmatpush.msra.mxu0 0.0
      %815 = vmatpush.msra.mxu0 0.0
      %816 = vmatpush.msra.mxu0 %v752
      %817 = vmatpush.msra.mxu0 %v751
      %818 = vmatpush.msra.mxu0 %v750
      %819 = vmatmul.f32.gmra.mxu0 %v756
      %v820 = vpop.f32.mrf.mxu0
      %v821 = vadd.f32 %v753, %v820
      %822 = vmatmul.f32.gmra.mxu0 %v759
      %v823 = vpop.f32.mrf.mxu0
      %v824 = vadd.f32 %v753, %v823
      %825 = vmatmul.f32.gmra.mxu0 %v762
      %v826 = vpop.f32.mrf.mxu0
      %v827 = vadd.f32 %v753, %v826
      %828 = vmatmul.f32.gmra.mxu0 %v765
      %v829 = vpop.f32.mrf.mxu0
      %v830 = vadd.f32 %v753, %v829
      %831 = vmatmul.f32.gmra.mxu0 %v768
      %v832 = vpop.f32.mrf.mxu0
      %v833 = vadd.f32 %v753, %v832
      %834 = vmatmul.f32.gmra.mxu0 %v771
      %v835 = vpop.f32.mrf.mxu0
      %v836 = vadd.f32 %v753, %v835
      %837 = vmatmul.f32.gmra.mxu0 %v774
      %v838 = vpop.f32.mrf.mxu0
      %v839 = vadd.f32 %v753, %v838
      %840 = vmatmul.f32.gmra.mxu0 %v777
      %v841 = vpop.f32.mrf.mxu0
      %v842 = vadd.f32 %v753, %v841
      %843 = vmatmul.f32.gmra.mxu0 %v780
      %v844 = vpop.f32.mrf.mxu0
      %v845 = vadd.f32 %v753, %v844
      %846 = vmatmul.f32.gmra.mxu0 %v783
      %v847 = vpop.f32.mrf.mxu0
      %v848 = vadd.f32 %v753, %v847
      %849 = vmatmul.f32.gmra.mxu0 %v786
      %v850 = vpop.f32.mrf.mxu0
      %v851 = vadd.f32 %v753, %v850
      %852 = vmatmul.f32.gmra.mxu0 %v789
      %v853 = vpop.f32.mrf.mxu0
      %v854 = vadd.f32 %v753, %v853
      %855 = vmatmul.f32.gmra.mxu0 %v792
      %v856 = vpop.f32.mrf.mxu0
      %v857 = vadd.f32 %v753, %v856
      %858 = vmatmul.f32.gmra.mxu0 %v795
      %v859 = vpop.f32.mrf.mxu0
      %v860 = vadd.f32 %v753, %v859
      %861 = vmatmul.f32.gmra.mxu0 %v798
      %v862 = vpop.f32.mrf.mxu0
      %v863 = vadd.f32 %v753, %v862
      %864 = vmatmul.f32.gmra.mxu0 %v801
      %v865 = vpop.f32.mrf.mxu0
      %v866 = vadd.f32 %v753, %v865
      %867 = vdwg.mxu0
      %v868 = vlaneseq
      %v869 = vand.u32 %v868, 127
      %vm870 = vcmp.ge.s32.totalorder %v869, 64
      %vm871 = vcmp.lt.s32.totalorder %v869, 80
      %vm872 = vmand %vm870, %vm871
      %vm873 = vcmp.ge.s32.totalorder %v869, 80
      %vm874 = vcmp.lt.s32.totalorder %v869, 96
      %vm875 = vmand %vm873, %vm874
      %v876 = vsel %vm875, %v821, 0.0
      %v877 = vsel %vm875, %v824, 0.0
      %v878 = vsel %vm875, %v827, 0.0
      %v879 = vsel %vm875, %v830, 0.0
      %v880 = vsel %vm875, %v833, 0.0
      %v881 = vsel %vm875, %v836, 0.0
      %v882 = vsel %vm875, %v839, 0.0
      %v883 = vsel %vm875, %v842, 0.0
      %v884 = vsel %vm875, %v845, 0.0
      %v885 = vsel %vm875, %v848, 0.0
      %v886 = vsel %vm875, %v851, 0.0
      %v887 = vsel %vm875, %v854, 0.0
      %v888 = vsel %vm875, %v857, 0.0
      %v889 = vsel %vm875, %v860, 0.0
      %v890 = vsel %vm875, %v863, 0.0
      %v891 = vsel %vm875, %v866, 0.0
      %v892 = vmul.f32 %v876, 1.442695
      %v893 = vpow.pop %v892
      %v894 = vmul.f32 %v877, 1.442695
      %v895 = vpow.pop %v894
      %v896 = vmul.f32 %v878, 1.442695
      %v897 = vpow.pop %v896
      %v898 = vmul.f32 %v879, 1.442695
      %v899 = vpow.pop %v898
      %v900 = vmul.f32 %v880, 1.442695
      %v901 = vpow.pop %v900
      %v902 = vmul.f32 %v881, 1.442695
      %v903 = vpow.pop %v902
      %v904 = vmul.f32 %v882, 1.442695
      %v905 = vpow.pop %v904
      %v906 = vmul.f32 %v883, 1.442695
      %v907 = vpow.pop %v906
      %v908 = vmul.f32 %v884, 1.442695
      %v909 = vpow.pop %v908
      %v910 = vmul.f32 %v885, 1.442695
      %v911 = vpow.pop %v910
      %v912 = vmul.f32 %v886, 1.442695
      %v913 = vpow.pop %v912
      %v914 = vmul.f32 %v887, 1.442695
      %v915 = vpow.pop %v914
      %v916 = vmul.f32 %v888, 1.442695
      %v917 = vpow.pop %v916
      %v918 = vmul.f32 %v889, 1.442695
      %v919 = vpow.pop %v918
      %v920 = vmul.f32 %v890, 1.442695
      %v921 = vpow.pop %v920
      %v922 = vmul.f32 %v891, 1.442695
      %v923 = vpow.pop %v922
      %v924 = vsel %vm875, %v893, 0.0
      %v925 = vsel %vm875, %v895, 0.0
      %v926 = vsel %vm875, %v897, 0.0
      %v927 = vsel %vm875, %v899, 0.0
      %v928 = vsel %vm875, %v901, 0.0
      %v929 = vsel %vm875, %v903, 0.0
      %v930 = vsel %vm875, %v905, 0.0
      %v931 = vsel %vm875, %v907, 0.0
      %v932 = vsel %vm875, %v909, 0.0
      %v933 = vsel %vm875, %v911, 0.0
      %v934 = vsel %vm875, %v913, 0.0
      %v935 = vsel %vm875, %v915, 0.0
      %v936 = vsel %vm875, %v917, 0.0
      %v937 = vsel %vm875, %v919, 0.0
      %v938 = vsel %vm875, %v921, 0.0
      %v939 = vsel %vm875, %v923, 0.0
      %v940 = vmul.f32 %v924, %v364
      %v941 = vmul.f32 %v925, %v365
      %v942 = vmul.f32 %v926, %v366
      %v943 = vmul.f32 %v927, %v367
      %v944 = vmul.f32 %v928, %v368
      %v945 = vmul.f32 %v929, %v369
      %v946 = vmul.f32 %v930, %v370
      %v947 = vmul.f32 %v931, %v371
      %v948 = vmul.f32 %v932, %v372
      %v949 = vmul.f32 %v933, %v373
      %v950 = vmul.f32 %v934, %v374
      %v951 = vmul.f32 %v935, %v375
      %v952 = vmul.f32 %v936, %v376
      %v953 = vmul.f32 %v937, %v377
      %v954 = vmul.f32 %v938, %v378
      %v955 = vmul.f32 %v939, %v379
      %v956 = vsel %vm872, %v821, %v940
      %v957 = vsel %vm872, %v824, %v941
      %v958 = vsel %vm872, %v827, %v942
      %v959 = vsel %vm872, %v830, %v943
      %v960 = vsel %vm872, %v833, %v944
      %v961 = vsel %vm872, %v836, %v945
      %v962 = vsel %vm872, %v839, %v946
      %v963 = vsel %vm872, %v842, %v947
      %v964 = vsel %vm872, %v845, %v948
      %v965 = vsel %vm872, %v848, %v949
      %v966 = vsel %vm872, %v851, %v950
      %v967 = vsel %vm872, %v854, %v951
      %v968 = vsel %vm872, %v857, %v952
      %v969 = vsel %vm872, %v860, %v953
      %v970 = vsel %vm872, %v863, %v954
      %v971 = vsel %vm872, %v866, %v955
      %v972 = vld [vmem:[%s5] sm:$0xff]
      %v973 = vld [vmem:[%s5 + $0x8] sm:$0xff]
      %v974 = vld [vmem:[%s5 + $0x10] sm:$0xff]
      %v975 = vld [vmem:[%s5 + $0x18] sm:$0xff]
      %v976 = vld [vmem:[%s5 + $0x20] sm:$0xff]
      %v977 = vld [vmem:[%s5 + $0x28] sm:$0xff]
      %v978 = vld [vmem:[%s5 + $0x30] sm:$0xff]
      %v979 = vld [vmem:[%s5 + $0x38] sm:$0xff]
      %v980 = vld [vmem:[%s5 + $0x40] sm:$0xff]
      %v981 = vld [vmem:[%s5 + $0x48] sm:$0xff]
      %v982 = vld [vmem:[%s5 + $0x50] sm:$0xff]
      %v983 = vld [vmem:[%s5 + $0x58] sm:$0xff]
      %v984 = vld [vmem:[%s5 + $0x60] sm:$0xff]
      %v985 = vld [vmem:[%s5 + $0x68] sm:$0xff]
      %v986 = vld [vmem:[%s5 + $0x70] sm:$0xff]
      %v987 = vld [vmem:[%s5 + $0x78] sm:$0xff]
      %v988 = vperm.slane %v363, 4
      %989 = vmatpush.msra.mxu0 %v987
      %990 = vmatpush.msra.mxu0 %v986
      %991 = vmatpush.msra.mxu0 %v985
      %992 = vmatpush.msra.mxu0 %v984
      %993 = vmatpush.msra.mxu0 %v983
      %994 = vmatpush.msra.mxu0 %v982
      %995 = vmatpush.msra.mxu0 %v981
      %996 = vmatpush.msra.mxu0 %v980
      %997 = vmatpush.msra.mxu0 %v979
      %998 = vmatpush.msra.mxu0 %v978
      %999 = vmatpush.msra.mxu0 %v977
      %1000 = vmatpush.msra.mxu0 %v976
      %1001 = vmatpush.msra.mxu0 %v975
      %1002 = vmatpush.msra.mxu0 %v974
      %1003 = vmatpush.msra.mxu0 %v973
      %1004 = vmatpush.msra.mxu0 %v972
      %1005 = vmatmul.f32.gmra.mxu0 %v956
      %v1006 = vpop.f32.mrf.mxu0
      %v1007 = vadd.f32 %v988, %v1006
      %1008 = vmatmul.f32.gmra.mxu0 %v957
      %v1009 = vpop.f32.mrf.mxu0
      %v1010 = vadd.f32 %v988, %v1009
      %1011 = vmatmul.f32.gmra.mxu0 %v958
      %v1012 = vpop.f32.mrf.mxu0
      %v1013 = vadd.f32 %v988, %v1012
      %1014 = vmatmul.f32.gmra.mxu0 %v959
      %v1015 = vpop.f32.mrf.mxu0
      %v1016 = vadd.f32 %v988, %v1015
      %1017 = vmatmul.f32.gmra.mxu0 %v960
      %v1018 = vpop.f32.mrf.mxu0
      %v1019 = vadd.f32 %v988, %v1018
      %1020 = vmatmul.f32.gmra.mxu0 %v961
      %v1021 = vpop.f32.mrf.mxu0
      %v1022 = vadd.f32 %v988, %v1021
      %1023 = vmatmul.f32.gmra.mxu0 %v962
      %v1024 = vpop.f32.mrf.mxu0
      %v1025 = vadd.f32 %v988, %v1024
      %1026 = vmatmul.f32.gmra.mxu0 %v963
      %v1027 = vpop.f32.mrf.mxu0
      %v1028 = vadd.f32 %v988, %v1027
      %1029 = vmatmul.f32.gmra.mxu0 %v964
      %v1030 = vpop.f32.mrf.mxu0
      %v1031 = vadd.f32 %v988, %v1030
      %1032 = vmatmul.f32.gmra.mxu0 %v965
      %v1033 = vpop.f32.mrf.mxu0
      %v1034 = vadd.f32 %v988, %v1033
      %1035 = vmatmul.f32.gmra.mxu0 %v966
      %v1036 = vpop.f32.mrf.mxu0
      %v1037 = vadd.f32 %v988, %v1036
      %1038 = vmatmul.f32.gmra.mxu0 %v967
      %v1039 = vpop.f32.mrf.mxu0
      %v1040 = vadd.f32 %v988, %v1039
      %1041 = vmatmul.f32.gmra.mxu0 %v968
      %v1042 = vpop.f32.mrf.mxu0
      %v1043 = vadd.f32 %v988, %v1042
      %1044 = vmatmul.f32.gmra.mxu0 %v969
      %v1045 = vpop.f32.mrf.mxu0
      %v1046 = vadd.f32 %v988, %v1045
      %1047 = vmatmul.f32.gmra.mxu0 %v970
      %v1048 = vpop.f32.mrf.mxu0
      %v1049 = vadd.f32 %v988, %v1048
      %1050 = vmatmul.f32.gmra.mxu0 %v971
      %v1051 = vpop.f32.mrf.mxu0
      %v1052 = vadd.f32 %v988, %v1051
      %1053 = vdwg.mxu0
      %v1054 = vmax.f32 %v1007, 0.0
      %v1055 = vmax.f32 %v1010, 0.0
      %v1056 = vmax.f32 %v1013, 0.0
      %v1057 = vmax.f32 %v1016, 0.0
      %v1058 = vmax.f32 %v1019, 0.0
      %v1059 = vmax.f32 %v1022, 0.0
      %v1060 = vmax.f32 %v1025, 0.0
      %v1061 = vmax.f32 %v1028, 0.0
      %v1062 = vmax.f32 %v1031, 0.0
      %v1063 = vmax.f32 %v1034, 0.0
      %v1064 = vmax.f32 %v1037, 0.0
      %v1065 = vmax.f32 %v1040, 0.0
      %v1066 = vmax.f32 %v1043, 0.0
      %v1067 = vmax.f32 %v1046, 0.0
      %v1068 = vmax.f32 %v1049, 0.0
      %v1069 = vmax.f32 %v1052, 0.0
      %v1070 = vld [vmem:[%s6] sm:$0xff]
      %v1071 = vld [vmem:[%s6 + $0x8] sm:$0xff]
      %v1072 = vld [vmem:[%s6 + $0x10] sm:$0xff]
      %v1073 = vperm.slane %v363, 5
      %v1075 = vsel %vm754, %v1054, 0
      %v1078 = vsel %vm754, %v1055, 0
      %v1081 = vsel %vm754, %v1056, 0
      %v1084 = vsel %vm754, %v1057, 0
      %v1087 = vsel %vm754, %v1058, 0
      %v1090 = vsel %vm754, %v1059, 0
      %v1093 = vsel %vm754, %v1060, 0
      %v1096 = vsel %vm754, %v1061, 0
      %v1099 = vsel %vm754, %v1062, 0
      %v1102 = vsel %vm754, %v1063, 0
      %v1105 = vsel %vm754, %v1064, 0
      %v1108 = vsel %vm754, %v1065, 0
      %v1111 = vsel %vm754, %v1066, 0
      %v1114 = vsel %vm754, %v1067, 0
      %v1117 = vsel %vm754, %v1068, 0
      %v1120 = vsel %vm754, %v1069, 0
      %1122 = vmatpush.msra.mxu0 0.0
      %1123 = vmatpush.msra.mxu0 0.0
      %1124 = vmatpush.msra.mxu0 0.0
      %1125 = vmatpush.msra.mxu0 0.0
      %1126 = vmatpush.msra.mxu0 0.0
      %1127 = vmatpush.msra.mxu0 0.0
      %1128 = vmatpush.msra.mxu0 0.0
      %1129 = vmatpush.msra.mxu0 0.0
      %1130 = vmatpush.msra.mxu0 0.0
      %1131 = vmatpush.msra.mxu0 0.0
      %1132 = vmatpush.msra.mxu0 0.0
      %1133 = vmatpush.msra.mxu0 0.0
      %1134 = vmatpush.msra.mxu0 0.0
      %1135 = vmatpush.msra.mxu0 %v1072
      %1136 = vmatpush.msra.mxu0 %v1071
      %1137 = vmatpush.msra.mxu0 %v1070
      %1138 = vmatmul.f32.gmra.mxu0 %v1075
      %v1139 = vpop.f32.mrf.mxu0
      %v1140 = vadd.f32 %v1073, %v1139
      %1141 = vmatmul.f32.gmra.mxu0 %v1078
      %v1142 = vpop.f32.mrf.mxu0
      %v1143 = vadd.f32 %v1073, %v1142
      %1144 = vmatmul.f32.gmra.mxu0 %v1081
      %v1145 = vpop.f32.mrf.mxu0
      %v1146 = vadd.f32 %v1073, %v1145
      %1147 = vmatmul.f32.gmra.mxu0 %v1084
      %v1148 = vpop.f32.mrf.mxu0
      %v1149 = vadd.f32 %v1073, %v1148
      %1150 = vmatmul.f32.gmra.mxu0 %v1087
      %v1151 = vpop.f32.mrf.mxu0
      %v1152 = vadd.f32 %v1073, %v1151
      %1153 = vmatmul.f32.gmra.mxu0 %v1090
      %v1154 = vpop.f32.mrf.mxu0
      %v1155 = vadd.f32 %v1073, %v1154
      %1156 = vmatmul.f32.gmra.mxu0 %v1093
      %v1157 = vpop.f32.mrf.mxu0
      %v1158 = vadd.f32 %v1073, %v1157
      %1159 = vmatmul.f32.gmra.mxu0 %v1096
      %v1160 = vpop.f32.mrf.mxu0
      %v1161 = vadd.f32 %v1073, %v1160
      %1162 = vmatmul.f32.gmra.mxu0 %v1099
      %v1163 = vpop.f32.mrf.mxu0
      %v1164 = vadd.f32 %v1073, %v1163
      %1165 = vmatmul.f32.gmra.mxu0 %v1102
      %v1166 = vpop.f32.mrf.mxu0
      %v1167 = vadd.f32 %v1073, %v1166
      %1168 = vmatmul.f32.gmra.mxu0 %v1105
      %v1169 = vpop.f32.mrf.mxu0
      %v1170 = vadd.f32 %v1073, %v1169
      %1171 = vmatmul.f32.gmra.mxu0 %v1108
      %v1172 = vpop.f32.mrf.mxu0
      %v1173 = vadd.f32 %v1073, %v1172
      %1174 = vmatmul.f32.gmra.mxu0 %v1111
      %v1175 = vpop.f32.mrf.mxu0
      %v1176 = vadd.f32 %v1073, %v1175
      %1177 = vmatmul.f32.gmra.mxu0 %v1114
      %v1178 = vpop.f32.mrf.mxu0
      %v1179 = vadd.f32 %v1073, %v1178
      %1180 = vmatmul.f32.gmra.mxu0 %v1117
      %v1181 = vpop.f32.mrf.mxu0
      %v1182 = vadd.f32 %v1073, %v1181
      %1183 = vmatmul.f32.gmra.mxu0 %v1120
      %v1184 = vpop.f32.mrf.mxu0
      %v1185 = vadd.f32 %v1073, %v1184
      %1186 = vdwg.mxu0
      %v1187 = vmax.f32 %v1140, 0.0
      %v1188 = vmax.f32 %v1143, 0.0
      %v1189 = vmax.f32 %v1146, 0.0
      %v1190 = vmax.f32 %v1149, 0.0
      %v1191 = vmax.f32 %v1152, 0.0
      %v1192 = vmax.f32 %v1155, 0.0
      %v1193 = vmax.f32 %v1158, 0.0
      %v1194 = vmax.f32 %v1161, 0.0
      %v1195 = vmax.f32 %v1164, 0.0
      %v1196 = vmax.f32 %v1167, 0.0
      %v1197 = vmax.f32 %v1170, 0.0
      %v1198 = vmax.f32 %v1173, 0.0
      %v1199 = vmax.f32 %v1176, 0.0
      %v1200 = vmax.f32 %v1179, 0.0
      %v1201 = vmax.f32 %v1182, 0.0
      %v1202 = vmax.f32 %v1185, 0.0
      %v1203 = vld [vmem:[%s7] sm:$0xff]
      %v1204 = vld [vmem:[%s7 + $0x8] sm:$0xff]
      %v1205 = vld [vmem:[%s7 + $0x10] sm:$0xff]
      %v1206 = vld [vmem:[%s7 + $0x18] sm:$0xff]
      %v1207 = vperm.slane %v363, 6
      %v1209 = vsel %vm620, %v1187, 0
      %v1212 = vsel %vm620, %v1188, 0
      %v1215 = vsel %vm620, %v1189, 0
      %v1218 = vsel %vm620, %v1190, 0
      %v1221 = vsel %vm620, %v1191, 0
      %v1224 = vsel %vm620, %v1192, 0
      %v1227 = vsel %vm620, %v1193, 0
      %v1230 = vsel %vm620, %v1194, 0
      %v1233 = vsel %vm620, %v1195, 0
      %v1236 = vsel %vm620, %v1196, 0
      %v1239 = vsel %vm620, %v1197, 0
      %v1242 = vsel %vm620, %v1198, 0
      %v1245 = vsel %vm620, %v1199, 0
      %v1248 = vsel %vm620, %v1200, 0
      %v1251 = vsel %vm620, %v1201, 0
      %v1254 = vsel %vm620, %v1202, 0
      %1256 = vmatpush.msra.mxu0 0.0
      %1257 = vmatpush.msra.mxu0 0.0
      %1258 = vmatpush.msra.mxu0 0.0
      %1259 = vmatpush.msra.mxu0 0.0
      %1260 = vmatpush.msra.mxu0 0.0
      %1261 = vmatpush.msra.mxu0 0.0
      %1262 = vmatpush.msra.mxu0 0.0
      %1263 = vmatpush.msra.mxu0 0.0
      %1264 = vmatpush.msra.mxu0 0.0
      %1265 = vmatpush.msra.mxu0 0.0
      %1266 = vmatpush.msra.mxu0 0.0
      %1267 = vmatpush.msra.mxu0 0.0
      %1268 = vmatpush.msra.mxu0 %v1206
      %1269 = vmatpush.msra.mxu0 %v1205
      %1270 = vmatpush.msra.mxu0 %v1204
      %1271 = vmatpush.msra.mxu0 %v1203
      %1272 = vmatmul.f32.gmra.mxu0 %v1209
      %v1273 = vpop.f32.mrf.mxu0
      %v1274 = vadd.f32 %v1207, %v1273
      %1275 = vmatmul.f32.gmra.mxu0 %v1212
      %v1276 = vpop.f32.mrf.mxu0
      %v1277 = vadd.f32 %v1207, %v1276
      %1278 = vmatmul.f32.gmra.mxu0 %v1215
      %v1279 = vpop.f32.mrf.mxu0
      %v1280 = vadd.f32 %v1207, %v1279
      %1281 = vmatmul.f32.gmra.mxu0 %v1218
      %v1282 = vpop.f32.mrf.mxu0
      %v1283 = vadd.f32 %v1207, %v1282
      %1284 = vmatmul.f32.gmra.mxu0 %v1221
      %v1285 = vpop.f32.mrf.mxu0
      %v1286 = vadd.f32 %v1207, %v1285
      %1287 = vmatmul.f32.gmra.mxu0 %v1224
      %v1288 = vpop.f32.mrf.mxu0
      %v1289 = vadd.f32 %v1207, %v1288
      %1290 = vmatmul.f32.gmra.mxu0 %v1227
      %v1291 = vpop.f32.mrf.mxu0
      %v1292 = vadd.f32 %v1207, %v1291
      %1293 = vmatmul.f32.gmra.mxu0 %v1230
      %v1294 = vpop.f32.mrf.mxu0
      %v1295 = vadd.f32 %v1207, %v1294
      %1296 = vmatmul.f32.gmra.mxu0 %v1233
      %v1297 = vpop.f32.mrf.mxu0
      %v1298 = vadd.f32 %v1207, %v1297
      %1299 = vmatmul.f32.gmra.mxu0 %v1236
      %v1300 = vpop.f32.mrf.mxu0
      %v1301 = vadd.f32 %v1207, %v1300
      %1302 = vmatmul.f32.gmra.mxu0 %v1239
      %v1303 = vpop.f32.mrf.mxu0
      %v1304 = vadd.f32 %v1207, %v1303
      %1305 = vmatmul.f32.gmra.mxu0 %v1242
      %v1306 = vpop.f32.mrf.mxu0
      %v1307 = vadd.f32 %v1207, %v1306
      %1308 = vmatmul.f32.gmra.mxu0 %v1245
      %v1309 = vpop.f32.mrf.mxu0
      %v1310 = vadd.f32 %v1207, %v1309
      %1311 = vmatmul.f32.gmra.mxu0 %v1248
      %v1312 = vpop.f32.mrf.mxu0
      %v1313 = vadd.f32 %v1207, %v1312
      %1314 = vmatmul.f32.gmra.mxu0 %v1251
      %v1315 = vpop.f32.mrf.mxu0
      %v1316 = vadd.f32 %v1207, %v1315
      %1317 = vmatmul.f32.gmra.mxu0 %v1254
      %v1318 = vpop.f32.mrf.mxu0
      %v1319 = vadd.f32 %v1207, %v1318
      %1320 = vdwg.mxu0
      %v1321 = vmax.f32 %v1274, 0.0
      %v1322 = vmax.f32 %v1277, 0.0
      %v1323 = vmax.f32 %v1280, 0.0
      %v1324 = vmax.f32 %v1283, 0.0
      %v1325 = vmax.f32 %v1286, 0.0
      %v1326 = vmax.f32 %v1289, 0.0
      %v1327 = vmax.f32 %v1292, 0.0
      %v1328 = vmax.f32 %v1295, 0.0
      %v1329 = vmax.f32 %v1298, 0.0
      %v1330 = vmax.f32 %v1301, 0.0
      %v1331 = vmax.f32 %v1304, 0.0
      %v1332 = vmax.f32 %v1307, 0.0
      %v1333 = vmax.f32 %v1310, 0.0
      %v1334 = vmax.f32 %v1313, 0.0
      %v1335 = vmax.f32 %v1316, 0.0
      %v1336 = vmax.f32 %v1319, 0.0
      %v1337 = vld [vmem:[%s8] sm:$0xff]
      %v1338 = vld [vmem:[%s8 + $0x8] sm:$0xff]
      %v1339 = vld [vmem:[%s8 + $0x10] sm:$0xff]
      %v1340 = vld [vmem:[%s8 + $0x18] sm:$0xff]
      %v1341 = vld [vmem:[%s8 + $0x20] sm:$0xff]
      %v1342 = vld [vmem:[%s8 + $0x28] sm:$0xff]
      %v1343 = vperm.slane %v363, 7
      %v1345 = vsel %vm485, %v1321, 0
      %v1348 = vsel %vm485, %v1322, 0
      %v1351 = vsel %vm485, %v1323, 0
      %v1354 = vsel %vm485, %v1324, 0
      %v1357 = vsel %vm485, %v1325, 0
      %v1360 = vsel %vm485, %v1326, 0
      %v1363 = vsel %vm485, %v1327, 0
      %v1366 = vsel %vm485, %v1328, 0
      %v1369 = vsel %vm485, %v1329, 0
      %v1372 = vsel %vm485, %v1330, 0
      %v1375 = vsel %vm485, %v1331, 0
      %v1378 = vsel %vm485, %v1332, 0
      %v1381 = vsel %vm485, %v1333, 0
      %v1384 = vsel %vm485, %v1334, 0
      %v1387 = vsel %vm485, %v1335, 0
      %v1390 = vsel %vm485, %v1336, 0
      %1392 = vmatpush.msra.mxu0 0.0
      %1393 = vmatpush.msra.mxu0 0.0
      %1394 = vmatpush.msra.mxu0 0.0
      %1395 = vmatpush.msra.mxu0 0.0
      %1396 = vmatpush.msra.mxu0 0.0
      %1397 = vmatpush.msra.mxu0 0.0
      %1398 = vmatpush.msra.mxu0 0.0
      %1399 = vmatpush.msra.mxu0 0.0
      %1400 = vmatpush.msra.mxu0 0.0
      %1401 = vmatpush.msra.mxu0 0.0
      %1402 = vmatpush.msra.mxu0 %v1342
      %1403 = vmatpush.msra.mxu0 %v1341
      %1404 = vmatpush.msra.mxu0 %v1340
      %1405 = vmatpush.msra.mxu0 %v1339
      %1406 = vmatpush.msra.mxu0 %v1338
      %1407 = vmatpush.msra.mxu0 %v1337
      %1408 = vmatmul.f32.gmra.mxu0 %v1345
      %v1409 = vpop.f32.mrf.mxu0
      %v1410 = vadd.f32 %v1343, %v1409
      %1411 = vmatmul.f32.gmra.mxu0 %v1348
      %v1412 = vpop.f32.mrf.mxu0
      %v1413 = vadd.f32 %v1343, %v1412
      %1414 = vmatmul.f32.gmra.mxu0 %v1351
      %v1415 = vpop.f32.mrf.mxu0
      %v1416 = vadd.f32 %v1343, %v1415
      %1417 = vmatmul.f32.gmra.mxu0 %v1354
      %v1418 = vpop.f32.mrf.mxu0
      %v1419 = vadd.f32 %v1343, %v1418
      %1420 = vmatmul.f32.gmra.mxu0 %v1357
      %v1421 = vpop.f32.mrf.mxu0
      %v1422 = vadd.f32 %v1343, %v1421
      %1423 = vmatmul.f32.gmra.mxu0 %v1360
      %v1424 = vpop.f32.mrf.mxu0
      %v1425 = vadd.f32 %v1343, %v1424
      %1426 = vmatmul.f32.gmra.mxu0 %v1363
      %v1427 = vpop.f32.mrf.mxu0
      %v1428 = vadd.f32 %v1343, %v1427
      %1429 = vmatmul.f32.gmra.mxu0 %v1366
      %v1430 = vpop.f32.mrf.mxu0
      %v1431 = vadd.f32 %v1343, %v1430
      %1432 = vmatmul.f32.gmra.mxu0 %v1369
      %v1433 = vpop.f32.mrf.mxu0
      %v1434 = vadd.f32 %v1343, %v1433
      %1435 = vmatmul.f32.gmra.mxu0 %v1372
      %v1436 = vpop.f32.mrf.mxu0
      %v1437 = vadd.f32 %v1343, %v1436
      %1438 = vmatmul.f32.gmra.mxu0 %v1375
      %v1439 = vpop.f32.mrf.mxu0
      %v1440 = vadd.f32 %v1343, %v1439
      %1441 = vmatmul.f32.gmra.mxu0 %v1378
      %v1442 = vpop.f32.mrf.mxu0
      %v1443 = vadd.f32 %v1343, %v1442
      %1444 = vmatmul.f32.gmra.mxu0 %v1381
      %v1445 = vpop.f32.mrf.mxu0
      %v1446 = vadd.f32 %v1343, %v1445
      %1447 = vmatmul.f32.gmra.mxu0 %v1384
      %v1448 = vpop.f32.mrf.mxu0
      %v1449 = vadd.f32 %v1343, %v1448
      %1450 = vmatmul.f32.gmra.mxu0 %v1387
      %v1451 = vpop.f32.mrf.mxu0
      %v1452 = vadd.f32 %v1343, %v1451
      %1453 = vmatmul.f32.gmra.mxu0 %v1390
      %v1454 = vpop.f32.mrf.mxu0
      %v1455 = vadd.f32 %v1343, %v1454
      %1456 = vdwg.mxu0
      %v1457 = vsel %vm872, %v821, %v924
      %v1458 = vsel %vm872, %v824, %v925
      %v1459 = vsel %vm872, %v827, %v926
      %v1460 = vsel %vm872, %v830, %v927
      %v1461 = vsel %vm872, %v833, %v928
      %v1462 = vsel %vm872, %v836, %v929
      %v1463 = vsel %vm872, %v839, %v930
      %v1464 = vsel %vm872, %v842, %v931
      %v1465 = vsel %vm872, %v845, %v932
      %v1466 = vsel %vm872, %v848, %v933
      %v1467 = vsel %vm872, %v851, %v934
      %v1468 = vsel %vm872, %v854, %v935
      %v1469 = vsel %vm872, %v857, %v936
      %v1470 = vsel %vm872, %v860, %v937
      %v1471 = vsel %vm872, %v863, %v938
      %v1472 = vsel %vm872, %v866, %v939
      %v1473 = vadd.f32 %v1410, %v1457
      %v1474 = vadd.f32 %v1413, %v1458
      %v1475 = vadd.f32 %v1416, %v1459
      %v1476 = vadd.f32 %v1419, %v1460
      %v1477 = vadd.f32 %v1422, %v1461
      %v1478 = vadd.f32 %v1425, %v1462
      %v1479 = vadd.f32 %v1428, %v1463
      %v1480 = vadd.f32 %v1431, %v1464
      %v1481 = vadd.f32 %v1434, %v1465
      %v1482 = vadd.f32 %v1437, %v1466
      %v1483 = vadd.f32 %v1440, %v1467
      %v1484 = vadd.f32 %v1443, %v1468
      %v1485 = vadd.f32 %v1446, %v1469
      %v1486 = vadd.f32 %v1449, %v1470
      %v1487 = vadd.f32 %v1452, %v1471
      %v1488 = vadd.f32 %v1455, %v1472
      %1489 = vst [vmem:[%s361] sm:$0xff] %v1473
      %1490 = vst [vmem:[%s361 + $0x8] sm:$0xff] %v1474
      %1491 = vst [vmem:[%s361 + $0x10] sm:$0xff] %v1475
      %1492 = vst [vmem:[%s361 + $0x18] sm:$0xff] %v1476
      %1493 = vst [vmem:[%s361 + $0x20] sm:$0xff] %v1477
      %1494 = vst [vmem:[%s361 + $0x28] sm:$0xff] %v1478
      %1495 = vst [vmem:[%s361 + $0x30] sm:$0xff] %v1479
      %1496 = vst [vmem:[%s361 + $0x38] sm:$0xff] %v1480
      %1497 = vst [vmem:[%s361 + $0x40] sm:$0xff] %v1481
      %1498 = vst [vmem:[%s361 + $0x48] sm:$0xff] %v1482
      %1499 = vst [vmem:[%s361 + $0x50] sm:$0xff] %v1483
      %1500 = vst [vmem:[%s361 + $0x58] sm:$0xff] %v1484
      %1501 = vst [vmem:[%s361 + $0x60] sm:$0xff] %v1485
      %1502 = vst [vmem:[%s361 + $0x68] sm:$0xff] %v1486
      %1503 = vst [vmem:[%s361 + $0x70] sm:$0xff] %v1487
      %1504 = vst [vmem:[%s361 + $0x78] sm:$0xff] %v1488
      %s1505 = smul.u32 16, %s21
      %p1506 = scmp.lt.s32.totalorder %s1505, 31
      %s1507 = scalar_select %p1506, %s1505, 31
      %s1508 = smul.addr %s1507, 8
      %s1509 = scalar_lea.vmem %s10, %s1508
      // Predicated region
      $region61: #{vae_forward.1} parent=59 // pred_check
        %p1510 = pneg %p254
      $region62: #{vae_forward.1} parent=59 // pred_check_branch
        %1512 = sbr.rel (%p1510) target = $region64
      $region63: #{vae_forward.1} parent=59 // pred_region
        %s1513 = smul.u32 16, %s21
      $region64: #{vae_forward.1} parent=59 // pred_fallthru
        _
    $region60: #{vae_forward.1} parent=5 // pred_fallthru
      _
    %p1514 = scmp.le.s32.totalorder 2, %s16
    // Predicated region
    $region65: #{vae_forward.1} parent=5 // pred_check
      %p1515 = pneg %p1514
    $region66: #{vae_forward.1} parent=5 // pred_check_branch
      %1517 = sbr.rel (%p1515) target = $region68
    $region67: #{vae_forward.1} parent=5 // pred_region
      %s1518 = ssub.s32 %s16, 2
      // Predicated region
      $region69: #{vae_forward.1} parent=67 // pred_check
        %p1519 = pneg %p260
      $region70: #{vae_forward.1} parent=67 // pred_check_branch
        %1521 = sbr.rel (%p1519) target = $region72
      $region71: #{vae_forward.1} parent=67 // pred_region
        %s1522 = smul.u32 16, %s22
        %p1523 = scmp.lt.s32.totalorder %s1522, 31
        %s1524 = scalar_select %p1523, %s1522, 31
        %s1525 = smul.addr %s1524, 8
        %s1526 = scalar_lea.vmem %s10, %s1525
      $region72: #{vae_forward.1} parent=67 // pred_fallthru
        _
    $region68: #{vae_forward.1} parent=5 // pred_fallthru
      _
  $region6: #{vae_forward.1} parent=0 // loop_footer
    %s20 = sadd.s32 1, %s16
  $region7: #{vae_forward.1} parent=0 // loop_footer_branch
    %15 = sbr.rel target = $region3
  $region8: #{vae_forward.1} parent=0 // loop_exit
    _

</llo_original>
